<compile_context>
chip_gen: v5e
topology: v5e:2x2
jax: 0.10.0
libtpu: 0.0.40
codegen_flags: <defaults>
</compile_context>

<pallas_src>
import functools

import jax
import jax.numpy as jnp
from jax import lax
from jax.experimental import pallas as pl
from jax.experimental.pallas import tpu as pltpu

F32 = jnp.float32


# ----------------------------- Pass 1: projections ---------------------------

def _proj_kernel(x_ref, wqk_ref, bqk_ref, wv_ref, bv_ref,
                 q_ref, k_ref, vt_ref, *, cq):
    hi = lax.Precision.HIGHEST          # match torch f32 conv accumulation
    x = x_ref[0].astype(F32)                                    # (C, TS)
    # q and k share one stacked matmul: one MXU weight push, one pass over x,
    # better MXU row utilisation than two Cq-row matmuls.
    qk = jnp.dot(wqk_ref[...], x,
                 preferred_element_type=F32, precision=hi) + bqk_ref[...]
    v = jnp.dot(wv_ref[...], x,
                preferred_element_type=F32, precision=hi) + bv_ref[...]
    q_ref[0] = qk[:cq, :].astype(q_ref.dtype)                   # (Cq, TS)
    k_ref[0] = qk[cq:, :].astype(k_ref.dtype)                   # (Cq, TS)
    # Store v transposed so the attention matmul p @ vT has natural
    # contraction dims; the transpose happens once per element here instead of
    # a large XLU transpose per query tile.
    vt_ref[0] = v.T.astype(vt_ref.dtype)                        # (TS, C)


# ----------------------- Pass 2: attention + residual ------------------------

def _attn_kernel(gamma_ref, q_ref, k_ref, vt_ref, xres_ref, o_ref,
                 m_sc, l_sc, acc_sc):
    ki = pl.program_id(2)

    @pl.when(ki == 0)
    def _init():
        m_sc[...] = jnp.full(m_sc.shape, -jnp.inf, F32)
        l_sc[...] = jnp.zeros(l_sc.shape, F32)
        acc_sc[...] = jnp.zeros(acc_sc.shape, F32)

    q = q_ref[0].astype(F32)       # (Cq, TQ)
    k = k_ref[0].astype(F32)       # (Cq, TK)
    vt = vt_ref[0].astype(F32)     # (TK, C)

    # HIGH (bf16_3x) instead of HIGHEST (bf16_6x) on the O(HW^2) matmuls:
    # ~2x fewer MXU passes, error ~1e-6 relative -- well inside tolerance.
    hp = lax.Precision.HIGH

    # energy[i, j] = sum_c q[c, i] * k[c, j]  -> (TQ, TK)
    s = lax.dot_general(q, k, (((0,), (0,)), ((), ())),
                        preferred_element_type=F32, precision=hp)

    # Online (flash-style) softmax state update, all in f32.
    m_prev = m_sc[...]
    m_new = jnp.maximum(m_prev, jnp.max(s, axis=-1, keepdims=True))   # (TQ, 1)
    alpha = jnp.exp(m_prev - m_new)                                   # (TQ, 1)
    p = jnp.exp(s - m_new)                                            # (TQ, TK)
    l_sc[...] = alpha * l_sc[...] + jnp.sum(p, axis=-1, keepdims=True)
    # Unnormalised output kept transposed (TQ, C): natural contraction with vT.
    acc_sc[...] = alpha * acc_sc[...] + jnp.dot(
        p, vt, preferred_element_type=F32, precision=hp)
    m_sc[...] = m_new

    @pl.when(ki == pl.num_programs(2) - 1)
    def _finalize():
        # Deferred softmax normalisation: one reciprocal per query row on the
        # EUP (plus a Newton step so accuracy matches a full f32 divide)
        # instead of TQ*TK VPU divides and a full normalised (TQ, TK) temp.
        l = l_sc[...]
        inv_l = pl.reciprocal(l, approx=True)
        inv_l = inv_l * (2.0 - l * inv_l)                 # Newton refinement
        out_t = acc_sc[...] * inv_l                       # (TQ, C)
        gamma = gamma_ref[0, 0]                           # scalar from SMEM
        # Only the small (TQ, C) result is transposed; output tile (C, TQ) is
        # lane-dense (TQ multiple of 128) -> unmasked stores.
        o_ref[0] = (gamma * out_t.T + xres_ref[0].astype(F32)).astype(o_ref.dtype)


# ------------------------- VMEM-budget-aware tiling --------------------------

def _vmem_capacity_bytes():
    try:
        return int(pltpu.get_tpu_info().vmem_capacity_bytes)
    except Exception:
        return 64 * 1024 * 1024          # conservative fallback (v7x per-core)


def _tile_candidates(hw):
    sizes = {s for s in (hw, 4096, 2048, 1024, 512, 256, 128)
             if s <= hw and hw % s == 0}
    return sorted(sizes, reverse=True)


def _attn_vmem_bytes(c, cq, tq, tk):
    b = 4
    blocks = 2 * (cq * tq + cq * tk + tk * c + 2 * c * tq) * b   # dbl-buffered I/O
    scratch = (2 * tq + tq * c) * b                              # m, l, acc
    temps = (3 * tq * tk + 2 * tq * c) * b                       # s, p, out_t
    return blocks + scratch + temps


def _choose_attn_tiles(hw, c, cq, budget):
    if hw % 128 != 0:
        # Fallback: single (possibly non-lane-aligned) tile.  Correct but
        # slower; prefer HW that is a multiple of 128.
        return hw, hw
    sizes = _tile_candidates(hw)
    # Prefer a fully resident key/value side (TK == HW): its block index is
    # invariant in qi/ki so it is DMA'd once per batch instead of per query
    # tile (no k/vT HBM re-reads).
    resident = [s for s in sizes if s >= 256] or sizes
    for tq in resident:
        if _attn_vmem_bytes(c, cq, tq, hw) <= budget:
            return tq, hw
    # Otherwise flash-style key tiling; HBM traffic scales with HW/TQ, so
    # maximise TQ first, then TK.
    for tq in sizes:
        for tk in sizes:
            if _attn_vmem_bytes(c, cq, tq, tk) <= budget:
                return tq, tk
    return sizes[-1], sizes[-1]


def _proj_vmem_bytes(c, cq, ts):
    b = 4
    blocks = 2 * (c * ts + 2 * cq * ts + ts * c) * b
    params = (2 * cq * c + 2 * cq + c * c + c) * b
    temps = (2 * cq * ts + 2 * c * ts) * b
    return blocks + params + temps


def _choose_proj_tile(hw, c, cq, budget):
    if hw % 128 != 0:
        return hw
    for ts in _tile_candidates(hw):
        if _proj_vmem_bytes(c, cq, ts) <= budget:
            return ts
    return 128


# --------------------------------- wrapper -----------------------------------

def dam_position_forward(x_nchw, wq, bq, wk, bk, wv, bv, gamma):
    """x_nchw: (N, C, H, W); wq/wk: (C//8, C); wv: (C, C); biases 1-D; gamma scalar."""
    N, C, H, W = x_nchw.shape
    Cq = wq.shape[0]
    HW = H * W

    cap = _vmem_capacity_bytes()
    vmem_limit = int(min(0.85 * cap, 100 * 1024 * 1024))
    budget = int(0.6 * cap)

    x = x_nchw.reshape(N, C, HW)

    # ---------------- Pass 1: 1x1-conv projections, once per element --------
    TS = _choose_proj_tile(HW, C, Cq, budget)
    num_st = HW // TS

    wqk = jnp.concatenate([wq, wk], axis=0).astype(F32)              # (2Cq, C)
    bqk = jnp.concatenate([bq, bk], axis=0).reshape(2 * Cq, 1).astype(F32)
    wv_f = wv.astype(F32)
    bv_f = bv.reshape(C, 1).astype(F32)

    proj_cost = pl.CostEstimate(
        flops=int(6 * 2 * N * HW * C * (2 * Cq + C)),   # f32 HIGHEST ~ 6 bf16 passes
        transcendentals=0,
        bytes_accessed=int(4 * (N * HW * (2 * C + 2 * Cq)
                                + (2 * Cq + C) * (C + 1))),
    )

    q, k, vt = pl.pallas_call(
        functools.partial(_proj_kernel, cq=Cq),
        out_shape=(
            jax.ShapeDtypeStruct((N, Cq, HW), F32),
            jax.ShapeDtypeStruct((N, Cq, HW), F32),
            jax.ShapeDtypeStruct((N, HW, C), F32),
        ),
        grid_spec=pltpu.PrefetchScalarGridSpec(
            num_scalar_prefetch=0,
            grid=(N, num_st),
            in_specs=[
                pl.BlockSpec((1, C, TS), lambda n, si: (n, 0, si)),   # x tile
                pl.BlockSpec((2 * Cq, C), lambda n, si: (0, 0)),      # wqk
                pl.BlockSpec((2 * Cq, 1), lambda n, si: (0, 0)),      # bqk
                pl.BlockSpec((C, C), lambda n, si: (0, 0)),           # wv
                pl.BlockSpec((C, 1), lambda n, si: (0, 0)),           # bv
            ],
            out_specs=[
                pl.BlockSpec((1, Cq, TS), lambda n, si: (n, 0, si)),  # q
                pl.BlockSpec((1, Cq, TS), lambda n, si: (n, 0, si)),  # k
                pl.BlockSpec((1, TS, C), lambda n, si: (n, si, 0)),   # vT
            ],
        ),
        compiler_params=pltpu.CompilerParams(
            dimension_semantics=("parallel", "parallel"),
            vmem_limit_bytes=vmem_limit,
        ),
        cost_estimate=proj_cost,
    )(x, wqk, bqk, wv_f, bv_f)

    # ---------------- Pass 2: attention + residual ---------------------------
    TQ, TK = _choose_attn_tiles(HW, C, Cq, budget)
    num_qt = HW // TQ
    num_kt = HW // TK

    gamma_arr = jnp.reshape(jnp.asarray(gamma, dtype=F32), (1, 1))

    kv_passes = 1 if TK == HW else num_qt      # k/vT HBM reads per batch
    attn_cost = pl.CostEstimate(
        flops=int(N * (3 * 2 * HW * HW * (Cq + C) + 8 * HW * HW + 4 * C * HW)),
        transcendentals=int(N * (HW * HW + 2 * HW)),
        bytes_accessed=int(4 * N * HW * (Cq + kv_passes * (Cq + C) + 2 * C)),
    )

    out = pl.pallas_call(
        _attn_kernel,
        out_shape=jax.ShapeDtypeStruct((N, C, HW), x_nchw.dtype),
        grid_spec=pltpu.PrefetchScalarGridSpec(
            num_scalar_prefetch=0,
            grid=(N, num_qt, num_kt),
            in_specs=[
                pl.BlockSpec(memory_space=pltpu.MemorySpace.SMEM),        # gamma
                pl.BlockSpec((1, Cq, TQ), lambda n, qi, ki: (n, 0, qi)),  # q tile
                pl.BlockSpec((1, Cq, TK), lambda n, qi, ki: (n, 0, ki)),  # k tile
                pl.BlockSpec((1, TK, C), lambda n, qi, ki: (n, ki, 0)),   # vT tile
                pl.BlockSpec((1, C, TQ), lambda n, qi, ki: (n, 0, qi)),   # residual
            ],
            out_specs=pl.BlockSpec((1, C, TQ), lambda n, qi, ki: (n, 0, qi)),
            scratch_shapes=[
                pltpu.VMEM((TQ, 1), F32),   # running max
                pltpu.VMEM((TQ, 1), F32),   # running denominator
                pltpu.VMEM((TQ, C), F32),   # unnormalised output (transposed)
            ],
        ),
        compiler_params=pltpu.CompilerParams(
            dimension_semantics=("parallel", "parallel", "arbitrary"),
            vmem_limit_bytes=vmem_limit,
        ),
        cost_estimate=attn_cost,
    )(gamma_arr, q, k, vt, x)

    return out.reshape(N, C, H, W)


# ------------------------------- reference -----------------------------------

def dam_position_reference(x_nchw, wq, bq, wk, bk, wv, bv, gamma):
    """Pure-JAX reference, mirroring the PyTorch forward in f32."""
    N, C, H, W = x_nchw.shape
    HW = H * W
    hi = lax.Precision.HIGHEST
    xr = x_nchw.reshape(N, C, HW).astype(jnp.float32)
    q = jnp.einsum("oc,ncs->nos", wq, xr, precision=hi) + bq[None, :, None]
    k = jnp.einsum("oc,ncs->nos", wk, xr, precision=hi) + bk[None, :, None]
    v = jnp.einsum("oc,ncs->nos", wv, xr, precision=hi) + bv[None, :, None]
    energy = jnp.einsum("nci,ncj->nij", q, k, precision=hi)      # (N, HW, HW)
    attn = jax.nn.softmax(energy, axis=-1)
    out = jnp.einsum("ncj,nij->nci", v, attn, precision=hi)      # (N, C, HW)
    out = gamma * out + xr
    return out.reshape(N, C, H, W).astype(x_nchw.dtype)


if __name__ == "__main__":
    key = jax.random.PRNGKey(0)
    kx, kqw, kqb, kkw, kkb, kvw, kvb = jax.random.split(key, 7)

    # C must be >= 8 so the query/key convs (C -> C // 8) are non-degenerate.
    N, C, H, W = 2, 32, 16, 16
    Cq = C // 8

    x = jax.random.normal(kx, (N, C, H, W), dtype=jnp.float32)

    # torch Conv2d default init: uniform(-1/sqrt(fan_in), 1/sqrt(fan_in)), fan_in = C.
    bound = 1.0 / (C ** 0.5)
    wq = jax.random.uniform(kqw, (Cq, C), minval=-bound, maxval=bound, dtype=jnp.float32)
    bq = jax.random.uniform(kqb, (Cq,), minval=-bound, maxval=bound, dtype=jnp.float32)
    wk = jax.random.uniform(kkw, (Cq, C), minval=-bound, maxval=bound, dtype=jnp.float32)
    bk = jax.random.uniform(kkb, (Cq,), minval=-bound, maxval=bound, dtype=jnp.float32)
    wv = jax.random.uniform(kvw, (C, C), minval=-bound, maxval=bound, dtype=jnp.float32)
    bv = jax.random.uniform(kvb, (C,), minval=-bound, maxval=bound, dtype=jnp.float32)
    # PyTorch initializes gamma to 0 (identity output); use a nonzero value
    # here so the attention path is actually exercised by the check.
    gamma = jnp.float32(0.75)

    out = dam_position_forward(x, wq, bq, wk, bk, wv, bv, gamma)
    out = jax.block_until_ready(out)

    ref = dam_position_reference(x, wq, bq, wk, bk, wv, bv, gamma)
    assert out.shape == (N, C, H, W)
    # HIGH-precision (bf16_3x) attention matmuls + Newton-refined EUP
    # reciprocal keep the kernel within a few 1e-5 of the f32 reference.
    assert jnp.allclose(out, ref, atol=5e-4, rtol=5e-4), "mismatch vs reference"

    print("KERNEL_OK")
</pallas_src>

<mosaic_0001>
module attributes {stable_mosaic.version = 11 : i64} {
  func.func @_proj_kernel(%arg0: i32, %arg1: i32, %arg2: memref<1x32x256xf32, #tpu.memory_space<vmem>>, %arg3: memref<8x32xf32, #tpu.memory_space<vmem>>, %arg4: memref<8x1xf32, #tpu.memory_space<vmem>>, %arg5: memref<32x32xf32, #tpu.memory_space<vmem>>, %arg6: memref<32x1xf32, #tpu.memory_space<vmem>>, %arg7: memref<1x4x256xf32, #tpu.memory_space<vmem>>, %arg8: memref<1x4x256xf32, #tpu.memory_space<vmem>>, %arg9: memref<1x256x32xf32, #tpu.memory_space<vmem>>) attributes {dimension_semantics = [#tpu.dimension_semantics<parallel>, #tpu.dimension_semantics<parallel>], iteration_bounds = array<i64: 2, 1>, scalar_prefetch = 0 : i64, scratch_operands = 0 : i64, tpu.core_type = #tpu.core_type<tc>, window_params = [{transform_indices = @transform_0, window_bounds = array<i64: 1, 32, 256>}, {pipeline_mode = #tpu.pipeline_mode<synchronous>, transform_indices = @transform_1, window_bounds = array<i64: 8, 32>}, {pipeline_mode = #tpu.pipeline_mode<synchronous>, transform_indices = @transform_2, window_bounds = array<i64: 8, 1>}, {pipeline_mode = #tpu.pipeline_mode<synchronous>, transform_indices = @transform_3, window_bounds = array<i64: 32, 32>}, {pipeline_mode = #tpu.pipeline_mode<synchronous>, transform_indices = @transform_4, window_bounds = array<i64: 32, 1>}, {transform_indices = @transform_5, window_bounds = array<i64: 1, 4, 256>}, {transform_indices = @transform_6, window_bounds = array<i64: 1, 4, 256>}, {transform_indices = @transform_7, window_bounds = array<i64: 1, 256, 32>}]} {
    %c0 = arith.constant 0 : index
    %c0_0 = arith.constant 0 : index
    %c0_1 = arith.constant 0 : index
    %0 = vector.load %arg2[%c0, %c0_0, %c0_1] : memref<1x32x256xf32, #tpu.memory_space<vmem>>, vector<1x32x256xf32>
    %1 = vector.shape_cast %0 : vector<1x32x256xf32> to vector<32x256xf32>
    %c0_2 = arith.constant 0 : index
    %c0_3 = arith.constant 0 : index
    %2 = vector.load %arg3[%c0_2, %c0_3] : memref<8x32xf32, #tpu.memory_space<vmem>>, vector<8x32xf32>
    %cst = arith.constant dense<0.000000e+00> : vector<8x256xf32>
    %3 = tpu.matmul %2, %1, %cst {dimension_numbers = #tpu.dot_dimension_numbers<[1], [0], [0], [1], [0, 0, 1, 1], [], []>, precision = #tpu.contract_precision<fp32>} : vector<8x32xf32>, vector<32x256xf32>, vector<8x256xf32> -> vector<8x256xf32>
    %c0_4 = arith.constant 0 : index
    %c0_5 = arith.constant 0 : index
    %4 = vector.load %arg4[%c0_4, %c0_5] : memref<8x1xf32, #tpu.memory_space<vmem>>, vector<8x1xf32>
    %5 = vector.broadcast %4 : vector<8x1xf32> to vector<8x256xf32>
    %6 = arith.addf %3, %5 : vector<8x256xf32>
    %c0_6 = arith.constant 0 : index
    %c0_7 = arith.constant 0 : index
    %7 = vector.load %arg5[%c0_6, %c0_7] : memref<32x32xf32, #tpu.memory_space<vmem>>, vector<32x32xf32>
    %cst_8 = arith.constant dense<0.000000e+00> : vector<32x256xf32>
    %8 = tpu.matmul %7, %1, %cst_8 {dimension_numbers = #tpu.dot_dimension_numbers<[1], [0], [0], [1], [0, 0, 1, 1], [], []>, precision = #tpu.contract_precision<fp32>} : vector<32x32xf32>, vector<32x256xf32>, vector<32x256xf32> -> vector<32x256xf32>
    %c0_9 = arith.constant 0 : index
    %c0_10 = arith.constant 0 : index
    %9 = vector.load %arg6[%c0_9, %c0_10] : memref<32x1xf32, #tpu.memory_space<vmem>>, vector<32x1xf32>
    %10 = vector.broadcast %9 : vector<32x1xf32> to vector<32x256xf32>
    %11 = arith.addf %8, %10 : vector<32x256xf32>
    %12 = vector.extract_strided_slice %6 {offsets = [0, 0], sizes = [4, 256], strides = [1, 1]} : vector<8x256xf32> to vector<4x256xf32>
    %c0_11 = arith.constant 0 : index
    %c0_12 = arith.constant 0 : index
    %c0_13 = arith.constant 0 : index
    %13 = vector.load %arg7[%c0_11, %c0_12, %c0_13] : memref<1x4x256xf32, #tpu.memory_space<vmem>>, vector<1x4x256xf32>
    %14 = vector.shape_cast %13 : vector<1x4x256xf32> to vector<4x256xf32>
    %15 = vector.shape_cast %12 : vector<4x256xf32> to vector<1x4x256xf32>
    tpu.vector_store %arg7[%c0_11, %c0_12, %c0_13], %15 {strides = array<i32>} : memref<1x4x256xf32, #tpu.memory_space<vmem>>, vector<1x4x256xf32>,
    %16 = vector.extract_strided_slice %6 {offsets = [4, 0], sizes = [4, 256], strides = [1, 1]} : vector<8x256xf32> to vector<4x256xf32>
    %c0_14 = arith.constant 0 : index
    %c0_15 = arith.constant 0 : index
    %c0_16 = arith.constant 0 : index
    %17 = vector.load %arg8[%c0_14, %c0_15, %c0_16] : memref<1x4x256xf32, #tpu.memory_space<vmem>>, vector<1x4x256xf32>
    %18 = vector.shape_cast %17 : vector<1x4x256xf32> to vector<4x256xf32>
    %19 = vector.shape_cast %16 : vector<4x256xf32> to vector<1x4x256xf32>
    tpu.vector_store %arg8[%c0_14, %c0_15, %c0_16], %19 {strides = array<i32>} : memref<1x4x256xf32, #tpu.memory_space<vmem>>, vector<1x4x256xf32>,
    %20 = tpu.transpose %11, [1, 0] : vector<32x256xf32> -> vector<256x32xf32>
    %c0_17 = arith.constant 0 : index
    %c0_18 = arith.constant 0 : index
    %c0_19 = arith.constant 0 : index
    %21 = vector.load %arg9[%c0_17, %c0_18, %c0_19] : memref<1x256x32xf32, #tpu.memory_space<vmem>>, vector<1x256x32xf32>
    %22 = vector.shape_cast %21 : vector<1x256x32xf32> to vector<256x32xf32>
    %23 = vector.shape_cast %20 : vector<256x32xf32> to vector<1x256x32xf32>
    tpu.vector_store %arg9[%c0_17, %c0_18, %c0_19], %23 {strides = array<i32>} : memref<1x256x32xf32, #tpu.memory_space<vmem>>, vector<1x256x32xf32>,
    return
  }
  func.func @transform_0(%arg0: i32, %arg1: i32) -> (i32, i32, i32) {
    %c0_i32 = arith.constant 0 : i32
    %c0_i32_0 = arith.constant 0 : i32
    return %arg0, %c0_i32, %arg1 : i32, i32, i32
  }
  func.func @transform_1(%arg0: i32, %arg1: i32) -> (i32, i32) {
    %c0_i32 = arith.constant 0 : i32
    %c0_i32_0 = arith.constant 0 : i32
    %c0_i32_1 = arith.constant 0 : i32
    return %c0_i32, %c0_i32_0 : i32, i32
  }
  func.func @transform_2(%arg0: i32, %arg1: i32) -> (i32, i32) {
    %c0_i32 = arith.constant 0 : i32
    %c0_i32_0 = arith.constant 0 : i32
    %c0_i32_1 = arith.constant 0 : i32
    return %c0_i32, %c0_i32_0 : i32, i32
  }
  func.func @transform_3(%arg0: i32, %arg1: i32) -> (i32, i32) {
    %c0_i32 = arith.constant 0 : i32
    %c0_i32_0 = arith.constant 0 : i32
    %c0_i32_1 = arith.constant 0 : i32
    return %c0_i32, %c0_i32_0 : i32, i32
  }
  func.func @transform_4(%arg0: i32, %arg1: i32) -> (i32, i32) {
    %c0_i32 = arith.constant 0 : i32
    %c0_i32_0 = arith.constant 0 : i32
    %c0_i32_1 = arith.constant 0 : i32
    return %c0_i32, %c0_i32_0 : i32, i32
  }
  func.func @transform_5(%arg0: i32, %arg1: i32) -> (i32, i32, i32) {
    %c0_i32 = arith.constant 0 : i32
    %c0_i32_0 = arith.constant 0 : i32
    return %arg0, %c0_i32, %arg1 : i32, i32, i32
  }
  func.func @transform_6(%arg0: i32, %arg1: i32) -> (i32, i32, i32) {
    %c0_i32 = arith.constant 0 : i32
    %c0_i32_0 = arith.constant 0 : i32
    return %arg0, %c0_i32, %arg1 : i32, i32, i32
  }
  func.func @transform_7(%arg0: i32, %arg1: i32) -> (i32, i32, i32) {
    %c0_i32 = arith.constant 0 : i32
    %c0_i32_0 = arith.constant 0 : i32
    return %arg0, %arg1, %c0_i32 : i32, i32, i32
  }
}

</mosaic_0001>

<llo_original>
// kernel: tpu_custom_call.1
$region0: #{tpu_custom_call.1}
  #allocation0 [shape = 'u32[]', space=smem, size = 0x4, offset = 0x4, fixed_abs, tag = 'smem constant byte address 0x4 - core index']
  #allocation1 [shape = 'u32[72,128]{1,0:T(1,128)}', space=vmem, size = 0x9000, scoped, tag = 'internal scratch']
  %s0 = inlined_call_operand.hbm [shape: f32[2,32,256], index: 0, kind: input, shape index: {}]
  %s1 = inlined_call_operand.vmem [shape: f32[8,32], index: 1, kind: input, shape index: {}]
  %s2 = inlined_call_operand.vmem [shape: f32[8,1], index: 2, kind: input, shape index: {}]
  %s3 = inlined_call_operand.vmem [shape: f32[32,32], index: 3, kind: input, shape index: {}]
  %s4 = inlined_call_operand.vmem [shape: f32[32,1], index: 4, kind: input, shape index: {}]
  %s5 = inlined_call_operand.hbm [shape: f32[2,4,256], index: 5, kind: output, shape index: {0}]
  %s6 = inlined_call_operand.hbm [shape: f32[2,4,256], index: 6, kind: output, shape index: {1}]
  %s7 = inlined_call_operand.vmem [shape: f32[2,256,32], index: 7, kind: output, shape index: {2}]
  %8 = xla_tuple %s5, %s6, %s7
  %s9 = sld [smem:[#allocation0]]
  $region73: #{tpu_custom_call.1} parent=0
    _
  %s11 = ssub.s32 1, %s9
  %s12 = scalar_select 0, %s11, %s9
  $region1: #{tpu_custom_call.1} parent=0
    #allocation2 [shape = 'u8[65536]{0}', space=vmem, size = 0x10000, scoped, tag = 'input window, operand 0']
    #allocation3 [shape = 's32[2]{0}', space=sflag, size = 0x8, scoped, tag = 'scoped memory for tpu_custom_call.1']
    #allocation4 [shape = 's32[2]{0}', space=sflag, size = 0x8, scoped, tag = 'scoped memory for tpu_custom_call.1']
    #allocation5 [shape = 'u8[8192]{0}', space=vmem, size = 0x2000, scoped, tag = 'output window, operand 0']
    #allocation6 [shape = 'u8[8192]{0}', space=vmem, size = 0x2000, scoped, tag = 'output window, operand 1']
    #allocation7 [shape = 's32[2]{0}', space=sflag, size = 0x8, scoped, tag = 'scoped memory for tpu_custom_call.1']
    %13 = vsyncpa [#allocation3], 0
    %s14 = scalar_lea.sflag [#allocation3], 1
    %15 = vsyncpa %s14, 0
    %16 = vsyncpa [#allocation4], 0
    %s17 = scalar_lea.sflag [#allocation4], 1
    %18 = vsyncpa %s17, 0
    %19 = vsyncpa [#allocation7], 0
    %s20 = scalar_lea.sflag [#allocation7], 1
    %21 = vsyncpa %s20, 0
    loop: start=0, step=1, limit=4
    $region2: #{tpu_custom_call.1} parent=1 // loop_pre_header
      _
    $region3: #{tpu_custom_call.1} parent=1 // loop_header
      %s23 = sphi 0, %s27
      %p24 = scmp.ge.s32.totalorder %s23, 4
      %s30 = sphi 0, %s42
      %s31 = sphi 0, %s38
      %s32 = sphi 0, %s30
      %s33 = sphi 0, %s31
      %s34 = sphi 0, %s32
      %s35 = sphi 0, %s33
      %s47 = sphi 0, %s49
      %s50 = sphi 0, %s47
      %s51 = sphi 0, %s50
      %s67 = sphi 0, %s51
      %s71 = sphi 0, %s71
      %s73 = sphi 0, %s71
      %s74 = sphi 0, %s73
      %s88 = sphi 0, %s74
      %s92 = sphi 0, %s92
      %s94 = sphi 0, %s92
      %s95 = sphi 0, %s94
      %s109 = sphi 0, %s95
      %s113 = sphi 0, %s113
      %s115 = sphi 0, %s113
      %s116 = sphi 0, %s115
      %s130 = sphi 0, %s116
      %s134 = sphi 0, %s134
      %s136 = sphi 0, %s134
      %s137 = sphi 0, %s136
      %s151 = sphi 0, %s137
      %s159 = sphi 0, %s161
      %s162 = sphi 0, %s159
      %s163 = sphi 0, %s162
      %s179 = sphi 0, %s163
      %s187 = sphi 0, %s189
      %s190 = sphi 0, %s187
      %s191 = sphi 0, %s190
      %s207 = sphi 0, %s191
      %s215 = sphi 0, %s217
      %s218 = sphi 0, %s215
      %s219 = sphi 0, %s218
      %s235 = sphi 0, %s219
    $region4: #{tpu_custom_call.1} parent=1 // loop_header_branch
      %26 = sbr.rel (%p24) target = $region8
    $region5: #{tpu_custom_call.1} parent=1 // loop_body
      %s28 = ssub.s32 %s23, 1
      %s29 = ssub.s32 %s23, 2
      %s36 = sadd.s32 1, %s31
      %p37 = scmp.ge.s32.totalorder %s36, 1
      %s38 = scalar_select %p37, 0, %s36
      %s39 = sadd.s32 1, %s30
      %s40 = scalar_select %p37, %s39, %s30
      %p41 = scmp.ge.s32.totalorder %s40, 2
      %s42 = scalar_select %p41, 0, %s40
      %s43 = ssub.s32 %s30, %s42
      %s44 = ssub.s32 %s31, %s38
      %s45 = sor.u32 %s43, %s44
      %p46 = scmp.eq.s32.totalorder %s45, 0
      %s48 = sadd.s32 %s47, 1
      %s49 = scalar_select %p46, %s47, %s48
      %p52 = pneg %p46
      %p53 = scmp.eq.s32.totalorder %s23, 1
      %p54 = por %p52, %p53
      %p55 = scmp.ne.s32.totalorder %s47, %s50
      %p56 = scmp.eq.s32.totalorder %s23, 0
      %p57 = por %p55, %p56
      %p58 = scmp.ne.s32.totalorder %s47, %s50
      %p59 = scmp.eq.s32.totalorder %s28, 1
      %p60 = por %p58, %p59
      %p61 = scmp.ne.s32.totalorder %s50, %s51
      %p62 = scmp.eq.s32.totalorder %s28, 0
      %p63 = por %p61, %p62
      %p64 = scmp.ne.s32.totalorder %s50, %s51
      %p65 = scmp.eq.s32.totalorder %s29, 1
      %p66 = por %p64, %p65
      %p68 = scmp.ne.s32.totalorder %s51, %s67
      %p69 = scmp.eq.s32.totalorder %s29, 0
      %p70 = por %p68, %p69
      %s72 = sadd.s32 %s71, 1
      %p75 = scmp.eq.s32.totalorder %s23, 1
      %p76 = scmp.ne.s32.totalorder %s71, %s73
      %p77 = scmp.eq.s32.totalorder %s23, 0
      %p78 = por %p76, %p77
      %p79 = scmp.ne.s32.totalorder %s71, %s73
      %p80 = scmp.eq.s32.totalorder %s28, 1
      %p81 = por %p79, %p80
      %p82 = scmp.ne.s32.totalorder %s73, %s74
      %p83 = scmp.eq.s32.totalorder %s28, 0
      %p84 = por %p82, %p83
      %p85 = scmp.ne.s32.totalorder %s73, %s74
      %p86 = scmp.eq.s32.totalorder %s29, 1
      %p87 = por %p85, %p86
      %p89 = scmp.ne.s32.totalorder %s74, %s88
      %p90 = scmp.eq.s32.totalorder %s29, 0
      %p91 = por %p89, %p90
      %s93 = sadd.s32 %s92, 1
      %p96 = scmp.eq.s32.totalorder %s23, 1
      %p97 = scmp.ne.s32.totalorder %s92, %s94
      %p98 = scmp.eq.s32.totalorder %s23, 0
      %p99 = por %p97, %p98
      %p100 = scmp.ne.s32.totalorder %s92, %s94
      %p101 = scmp.eq.s32.totalorder %s28, 1
      %p102 = por %p100, %p101
      %p103 = scmp.ne.s32.totalorder %s94, %s95
      %p104 = scmp.eq.s32.totalorder %s28, 0
      %p105 = por %p103, %p104
      %p106 = scmp.ne.s32.totalorder %s94, %s95
      %p107 = scmp.eq.s32.totalorder %s29, 1
      %p108 = por %p106, %p107
      %p110 = scmp.ne.s32.totalorder %s95, %s109
      %p111 = scmp.eq.s32.totalorder %s29, 0
      %p112 = por %p110, %p111
      %s114 = sadd.s32 %s113, 1
      %p117 = scmp.eq.s32.totalorder %s23, 1
      %p118 = scmp.ne.s32.totalorder %s113, %s115
      %p119 = scmp.eq.s32.totalorder %s23, 0
      %p120 = por %p118, %p119
      %p121 = scmp.ne.s32.totalorder %s113, %s115
      %p122 = scmp.eq.s32.totalorder %s28, 1
      %p123 = por %p121, %p122
      %p124 = scmp.ne.s32.totalorder %s115, %s116
      %p125 = scmp.eq.s32.totalorder %s28, 0
      %p126 = por %p124, %p125
      %p127 = scmp.ne.s32.totalorder %s115, %s116
      %p128 = scmp.eq.s32.totalorder %s29, 1
      %p129 = por %p127, %p128
      %p131 = scmp.ne.s32.totalorder %s116, %s130
      %p132 = scmp.eq.s32.totalorder %s29, 0
      %p133 = por %p131, %p132
      %s135 = sadd.s32 %s134, 1
      %p138 = scmp.eq.s32.totalorder %s23, 1
      %p139 = scmp.ne.s32.totalorder %s134, %s136
      %p140 = scmp.eq.s32.totalorder %s23, 0
      %p141 = por %p139, %p140
      %p142 = scmp.ne.s32.totalorder %s134, %s136
      %p143 = scmp.eq.s32.totalorder %s28, 1
      %p144 = por %p142, %p143
      %p145 = scmp.ne.s32.totalorder %s136, %s137
      %p146 = scmp.eq.s32.totalorder %s28, 0
      %p147 = por %p145, %p146
      %p148 = scmp.ne.s32.totalorder %s136, %s137
      %p149 = scmp.eq.s32.totalorder %s29, 1
      %p150 = por %p148, %p149
      %p152 = scmp.ne.s32.totalorder %s137, %s151
      %p153 = scmp.eq.s32.totalorder %s29, 0
      %p154 = por %p152, %p153
      %s155 = ssub.s32 %s30, %s42
      %s156 = ssub.s32 %s31, %s38
      %s157 = sor.u32 %s155, %s156
      %p158 = scmp.eq.s32.totalorder %s157, 0
      %s160 = sadd.s32 %s159, 1
      %s161 = scalar_select %p158, %s159, %s160
      %p164 = pneg %p158
      %p165 = scmp.eq.s32.totalorder %s23, 1
      %p166 = por %p164, %p165
      %p167 = scmp.ne.s32.totalorder %s159, %s162
      %p168 = scmp.eq.s32.totalorder %s23, 0
      %p169 = por %p167, %p168
      %p170 = scmp.ne.s32.totalorder %s159, %s162
      %p171 = scmp.eq.s32.totalorder %s28, 1
      %p172 = por %p170, %p171
      %p173 = scmp.ne.s32.totalorder %s162, %s163
      %p174 = scmp.eq.s32.totalorder %s28, 0
      %p175 = por %p173, %p174
      %p176 = scmp.ne.s32.totalorder %s162, %s163
      %p177 = scmp.eq.s32.totalorder %s29, 1
      %p178 = por %p176, %p177
      %p180 = scmp.ne.s32.totalorder %s163, %s179
      %p181 = scmp.eq.s32.totalorder %s29, 0
      %p182 = por %p180, %p181
      %s183 = ssub.s32 %s30, %s42
      %s184 = ssub.s32 %s31, %s38
      %s185 = sor.u32 %s183, %s184
      %p186 = scmp.eq.s32.totalorder %s185, 0
      %s188 = sadd.s32 %s187, 1
      %s189 = scalar_select %p186, %s187, %s188
      %p192 = pneg %p186
      %p193 = scmp.eq.s32.totalorder %s23, 1
      %p194 = por %p192, %p193
      %p195 = scmp.ne.s32.totalorder %s187, %s190
      %p196 = scmp.eq.s32.totalorder %s23, 0
      %p197 = por %p195, %p196
      %p198 = scmp.ne.s32.totalorder %s187, %s190
      %p199 = scmp.eq.s32.totalorder %s28, 1
      %p200 = por %p198, %p199
      %p201 = scmp.ne.s32.totalorder %s190, %s191
      %p202 = scmp.eq.s32.totalorder %s28, 0
      %p203 = por %p201, %p202
      %p204 = scmp.ne.s32.totalorder %s190, %s191
      %p205 = scmp.eq.s32.totalorder %s29, 1
      %p206 = por %p204, %p205
      %p208 = scmp.ne.s32.totalorder %s191, %s207
      %p209 = scmp.eq.s32.totalorder %s29, 0
      %p210 = por %p208, %p209
      %s211 = ssub.s32 %s30, %s42
      %s212 = ssub.s32 %s31, %s38
      %s213 = sor.u32 %s211, %s212
      %p214 = scmp.eq.s32.totalorder %s213, 0
      %s216 = sadd.s32 %s215, 1
      %s217 = scalar_select %p214, %s215, %s216
      %p220 = pneg %p214
      %p221 = scmp.eq.s32.totalorder %s23, 1
      %p222 = por %p220, %p221
      %p223 = scmp.ne.s32.totalorder %s215, %s218
      %p224 = scmp.eq.s32.totalorder %s23, 0
      %p225 = por %p223, %p224
      %p226 = scmp.ne.s32.totalorder %s215, %s218
      %p227 = scmp.eq.s32.totalorder %s28, 1
      %p228 = por %p226, %p227
      %p229 = scmp.ne.s32.totalorder %s218, %s219
      %p230 = scmp.eq.s32.totalorder %s28, 0
      %p231 = por %p229, %p230
      %p232 = scmp.ne.s32.totalorder %s218, %s219
      %p233 = scmp.eq.s32.totalorder %s29, 1
      %p234 = por %p232, %p233
      %p236 = scmp.ne.s32.totalorder %s219, %s235
      %p237 = scmp.eq.s32.totalorder %s29, 0
      %p238 = por %p236, %p237
      %p239 = scmp.le.s32.totalorder 1, %s23
      %p240 = scmp.lt.s32.totalorder %s23, 3
      %p241 = pnand %p239, %p240
      %p242 = pneg %p241
      // Predicated region
      $region9: #{tpu_custom_call.1} parent=5 // pred_check
        _
      $region10: #{tpu_custom_call.1} parent=5 // pred_check_branch
        %244 = sbr.rel (%p241) target = $region12
      $region11: #{tpu_custom_call.1} parent=5 // pred_region
        %s245 = ssub.s32 %s23, 1
        // Predicated region
        $region13: #{tpu_custom_call.1} parent=11 // pred_check
          %p246 = pneg %p84
        $region14: #{tpu_custom_call.1} parent=11 // pred_check_branch
          %248 = sbr.rel (%p246) target = $region16
        $region15: #{tpu_custom_call.1} parent=11 // pred_region
          _
        $region16: #{tpu_custom_call.1} parent=11 // pred_fallthru
          _
        // Predicated region
        $region17: #{tpu_custom_call.1} parent=11 // pred_check
          %p249 = pneg %p105
        $region18: #{tpu_custom_call.1} parent=11 // pred_check_branch
          %251 = sbr.rel (%p249) target = $region20
        $region19: #{tpu_custom_call.1} parent=11 // pred_region
          _
        $region20: #{tpu_custom_call.1} parent=11 // pred_fallthru
          _
        // Predicated region
        $region21: #{tpu_custom_call.1} parent=11 // pred_check
          %p252 = pneg %p126
        $region22: #{tpu_custom_call.1} parent=11 // pred_check_branch
          %254 = sbr.rel (%p252) target = $region24
        $region23: #{tpu_custom_call.1} parent=11 // pred_region
          _
        $region24: #{tpu_custom_call.1} parent=11 // pred_fallthru
          _
        // Predicated region
        $region25: #{tpu_custom_call.1} parent=11 // pred_check
          %p255 = pneg %p147
        $region26: #{tpu_custom_call.1} parent=11 // pred_check_branch
          %257 = sbr.rel (%p255) target = $region28
        $region27: #{tpu_custom_call.1} parent=11 // pred_region
          _
        $region28: #{tpu_custom_call.1} parent=11 // pred_fallthru
          _
      $region12: #{tpu_custom_call.1} parent=5 // pred_fallthru
        _
      %p258 = scmp.lt.s32.totalorder %s23, 2
      // Predicated region
      $region29: #{tpu_custom_call.1} parent=5 // pred_check
        %p259 = pneg %p258
      $region30: #{tpu_custom_call.1} parent=5 // pred_check_branch
        %261 = sbr.rel (%p259) target = $region32
      $region31: #{tpu_custom_call.1} parent=5 // pred_region
        // Predicated region
        $region33: #{tpu_custom_call.1} parent=31 // pred_check
          %p262 = pneg %p57
        $region34: #{tpu_custom_call.1} parent=31 // pred_check_branch
          %264 = sbr.rel (%p262) target = $region36
        $region35: #{tpu_custom_call.1} parent=31 // pred_region
          %s265 = sand.u32 %s47, 1
          %s266 = scalar_lea.sflag [#allocation3], %s265
          %s267 = sand.u32 %s47, 1
          %s268 = smul.addr %s267, 64
          %s269 = scalar_lea.vmem [#allocation2], %s268
          %s270 = smul.u32 2, %s31
          %272 = vsyncadd %s266, 0
          %s273 = smul.addr %s30, 8
          %s274 = sadd.s32 %s270, %s273
          %s275 = smul.addr %s274, 8
          %s276 = scalar_lea.hbm %s0, %s275
          %s277 = sshll.u32 %s276, 4
          %s278 = int_to_ptr.hbm [resolvable:$true] %s277
          %s279 = sshll.u32 %s269, 4
          %s280 = int_to_ptr.vmem [resolvable:$true] %s279
          %285 = dma.hbm_to_vmem [thread:$0]  %s278, 1024, %s280, %s266, 256, 256, 16
        $region36: #{tpu_custom_call.1} parent=31 // pred_fallthru
          _
      $region32: #{tpu_custom_call.1} parent=5 // pred_fallthru
        _
      %p286 = scmp.le.s32.totalorder 1, %s23
      %p287 = scmp.lt.s32.totalorder %s23, 3
      %p288 = pnand %p286, %p287
      %p289 = pneg %p288
      // Predicated region
      $region37: #{tpu_custom_call.1} parent=5 // pred_check
        _
      $region38: #{tpu_custom_call.1} parent=5 // pred_check_branch
        %291 = sbr.rel (%p288) target = $region40
      $region39: #{tpu_custom_call.1} parent=5 // pred_region
        %s292 = ssub.s32 %s23, 1
        %s293 = sand.u32 %s50, 1
        %s294 = scalar_lea.sflag [#allocation3], %s293
        %s295 = sand.u32 %s50, 1
        %s296 = smul.addr %s295, 64
        %s297 = scalar_lea.vmem [#allocation2], %s296
        // Predicated region
        $region41: #{tpu_custom_call.1} parent=39 // pred_check
          %p298 = pneg %p63
        $region42: #{tpu_custom_call.1} parent=39 // pred_check_branch
          %300 = sbr.rel (%p298) target = $region44
        $region43: #{tpu_custom_call.1} parent=39 // pred_region
          %302 = dma.done %s294, 1024
        $region44: #{tpu_custom_call.1} parent=39 // pred_fallthru
          _
        %s303 = sand.u32 %s50, 1
        %s304 = scalar_lea.sflag [#allocation3], %s303
        %s305 = sand.u32 %s50, 1
        %s306 = smul.addr %s305, 64
        %s307 = scalar_lea.vmem [#allocation2], %s306
        %p308 = pneg %p63
        %p309 = pneg %p60
        %p310 = pneg %p84
        %p311 = pneg %p81
        %p312 = pneg %p105
        %p313 = pneg %p102
        %p314 = pneg %p126
        %p315 = pneg %p123
        %p316 = pneg %p147
        %p317 = pneg %p144
        %p318 = pneg %p175
        %p319 = pneg %p172
        %s320 = sand.u32 %s162, 1
        %s321 = scalar_lea.sflag [#allocation4], %s320
        %s322 = sand.u32 %s162, 1
        %s323 = smul.addr %s322, 8
        %s324 = scalar_lea.vmem [#allocation5], %s323
        %p325 = pneg %p203
        %p326 = pneg %p200
        %s327 = sand.u32 %s190, 1
        %s328 = scalar_lea.sflag [#allocation7], %s327
        %s329 = sand.u32 %s190, 1
        %s330 = smul.addr %s329, 8
        %s331 = scalar_lea.vmem [#allocation6], %s330
        %p332 = pneg %p231
        %p333 = pneg %p228
        %s334 = smul.u32 32, %s33
        %p335 = scmp.lt.s32.totalorder %s32, 1
        %s336 = scalar_select %p335, %s32, 1
        %p337 = scmp.lt.s32.totalorder %s334, 31
        %s338 = scalar_select %p337, %s334, 31
        %s339 = smul.addr %s336, 32
        %s340 = sadd.s32 %s338, %s339
        %s341 = smul.addr %s340, 8
        %s342 = scalar_lea.vmem %s7, %s341
        %s343 = smul.u32 2, %s33
        %s344 = smul.u32 2, %s33
        %s345 = smul.u32 2, %s33
        %s346 = smul.u32 32, %s33
        %p347 = scmp.lt.s32.totalorder %s32, 1
        %s348 = scalar_select %p347, %s32, 1
        %p349 = scmp.lt.s32.totalorder %s346, 31
        %s350 = scalar_select %p349, %s346, 31
        %s351 = smul.addr %s348, 32
        %s352 = sadd.s32 %s350, %s351
        %s353 = smul.addr %s352, 8
        %s354 = scalar_lea.vmem %s7, %s353
        %s355 = smul.u32 32, %s33
        %v356 = vld [vmem:[%s297] sm:$0xff]
        %v357 = vld [vmem:[%s297 + $0x8] sm:$0xff]
        %v358 = vld [vmem:[%s297 + $0x10] sm:$0xff]
        %v359 = vld [vmem:[%s297 + $0x18] sm:$0xff]
        %v360 = vld [vmem:[%s297 + $0x20] sm:$0xff]
        %v361 = vld [vmem:[%s297 + $0x28] sm:$0xff]
        %v362 = vld [vmem:[%s297 + $0x30] sm:$0xff]
        %v363 = vld [vmem:[%s297 + $0x38] sm:$0xff]
        %v364 = vld [vmem:[%s1] sm:$0xff]
        %v365 = vld [vmem:[%s2] sm:$0xff]
        %367 = vset.pattern.permute.xlu0 0
        %368 = vperm.xlu0 %367, %v365
        %v369 = vpop.permute.xlu0 %368
        %vm371 = vcmask 261120
        %v373 = vsel %vm371, %v364, 0
        %375 = vmatpush.msra.mxu0 0.0
        %376 = vmatpush.msra.mxu0 0.0
        %377 = vmatpush.msra.mxu0 0.0
        %378 = vmatpush.msra.mxu0 0.0
        %379 = vmatpush.msra.mxu0 0.0
        %380 = vmatpush.msra.mxu0 0.0
        %381 = vmatpush.msra.mxu0 0.0
        %382 = vmatpush.msra.mxu0 0.0
        %383 = vmatpush.msra.mxu0 0.0
        %384 = vmatpush.msra.mxu0 0.0
        %385 = vmatpush.msra.mxu0 0.0
        %386 = vmatpush.msra.mxu0 0.0
        %v387 = vand.u32 %v362, 4294901760
        %388 = vmatpush.msra.mxu0 %v387
        %v389 = vand.u32 %v360, 4294901760
        %390 = vmatpush.msra.mxu0 %v389
        %v391 = vand.u32 %v358, 4294901760
        %392 = vmatpush.msra.mxu0 %v391
        %v393 = vand.u32 %v356, 4294901760
        %394 = vmatpush.msra.mxu0 %v393
        %v395 = vand.u32 %v373, 4294901760
        %v396 = vsub.f32 %v373, %v395
        %v397 = vand.u32 %v396, 4294901760
        %v398 = vsub.f32 %v396, %v397
        %v399 = vand.u32 %v398, 4294901760
        %400 = vmatmul.f32.gmra.mxu0 %v399
        %v401 = vpop.f32.mrf.mxu0
        %v402 = vadd.f32 %v369, %v401
        %403 = vdwg.mxu0
        %404 = vmatpush.msra.mxu0 0.0
        %405 = vmatpush.msra.mxu0 0.0
        %406 = vmatpush.msra.mxu0 0.0
        %407 = vmatpush.msra.mxu0 0.0
        %408 = vmatpush.msra.mxu0 0.0
        %409 = vmatpush.msra.mxu0 0.0
        %410 = vmatpush.msra.mxu0 0.0
        %411 = vmatpush.msra.mxu0 0.0
        %412 = vmatpush.msra.mxu0 0.0
        %413 = vmatpush.msra.mxu0 0.0
        %414 = vmatpush.msra.mxu0 0.0
        %415 = vmatpush.msra.mxu0 0.0
        %v416 = vand.u32 %v362, 4294901760
        %v417 = vsub.f32 %v362, %v416
        %v418 = vand.u32 %v417, 4294901760
        %v419 = vsub.f32 %v417, %v418
        %v420 = vand.u32 %v419, 4294901760
        %421 = vmatpush.msra.mxu0 %v420
        %v422 = vand.u32 %v360, 4294901760
        %v423 = vsub.f32 %v360, %v422
        %v424 = vand.u32 %v423, 4294901760
        %v425 = vsub.f32 %v423, %v424
        %v426 = vand.u32 %v425, 4294901760
        %427 = vmatpush.msra.mxu0 %v426
        %v428 = vand.u32 %v358, 4294901760
        %v429 = vsub.f32 %v358, %v428
        %v430 = vand.u32 %v429, 4294901760
        %v431 = vsub.f32 %v429, %v430
        %v432 = vand.u32 %v431, 4294901760
        %433 = vmatpush.msra.mxu0 %v432
        %v434 = vand.u32 %v356, 4294901760
        %v435 = vsub.f32 %v356, %v434
        %v436 = vand.u32 %v435, 4294901760
        %v437 = vsub.f32 %v435, %v436
        %v438 = vand.u32 %v437, 4294901760
        %439 = vmatpush.msra.mxu0 %v438
        %v440 = vand.u32 %v373, 4294901760
        %441 = vmatmul.f32.gmra.mxu0 %v440
        %v442 = vpop.f32.mrf.mxu0
        %v443 = vadd.f32 %v402, %v442
        %444 = vdwg.mxu0
        %445 = vmatpush.msra.mxu0 0.0
        %446 = vmatpush.msra.mxu0 0.0
        %447 = vmatpush.msra.mxu0 0.0
        %448 = vmatpush.msra.mxu0 0.0
        %449 = vmatpush.msra.mxu0 0.0
        %450 = vmatpush.msra.mxu0 0.0
        %451 = vmatpush.msra.mxu0 0.0
        %452 = vmatpush.msra.mxu0 0.0
        %453 = vmatpush.msra.mxu0 0.0
        %454 = vmatpush.msra.mxu0 0.0
        %455 = vmatpush.msra.mxu0 0.0
        %456 = vmatpush.msra.mxu0 0.0
        %v457 = vand.u32 %v362, 4294901760
        %v458 = vsub.f32 %v362, %v457
        %459 = vmatpush.msra.mxu0 %v458
        %v460 = vand.u32 %v360, 4294901760
        %v461 = vsub.f32 %v360, %v460
        %462 = vmatpush.msra.mxu0 %v461
        %v463 = vand.u32 %v358, 4294901760
        %v464 = vsub.f32 %v358, %v463
        %465 = vmatpush.msra.mxu0 %v464
        %v466 = vand.u32 %v356, 4294901760
        %v467 = vsub.f32 %v356, %v466
        %468 = vmatpush.msra.mxu0 %v467
        %v469 = vand.u32 %v373, 4294901760
        %v470 = vsub.f32 %v373, %v469
        %471 = vmatmul.f32.gmra.mxu0 %v470
        %v472 = vpop.f32.mrf.mxu0
        %v473 = vadd.f32 %v443, %v472
        %474 = vdwg.mxu0
        %475 = vmatpush.msra.mxu0 0.0
        %476 = vmatpush.msra.mxu0 0.0
        %477 = vmatpush.msra.mxu0 0.0
        %478 = vmatpush.msra.mxu0 0.0
        %479 = vmatpush.msra.mxu0 0.0
        %480 = vmatpush.msra.mxu0 0.0
        %481 = vmatpush.msra.mxu0 0.0
        %482 = vmatpush.msra.mxu0 0.0
        %483 = vmatpush.msra.mxu0 0.0
        %484 = vmatpush.msra.mxu0 0.0
        %485 = vmatpush.msra.mxu0 0.0
        %486 = vmatpush.msra.mxu0 0.0
        %v487 = vand.u32 %v362, 4294901760
        %488 = vmatpush.msra.mxu0 %v487
        %v489 = vand.u32 %v360, 4294901760
        %490 = vmatpush.msra.mxu0 %v489
        %v491 = vand.u32 %v358, 4294901760
        %492 = vmatpush.msra.mxu0 %v491
        %v493 = vand.u32 %v356, 4294901760
        %494 = vmatpush.msra.mxu0 %v493
        %v495 = vand.u32 %v373, 4294901760
        %v496 = vsub.f32 %v373, %v495
        %v497 = vand.u32 %v496, 4294901760
        %498 = vmatmul.f32.gmra.mxu0 %v497
        %v499 = vpop.f32.mrf.mxu0
        %v500 = vadd.f32 %v473, %v499
        %501 = vdwg.mxu0
        %502 = vmatpush.msra.mxu0 0.0
        %503 = vmatpush.msra.mxu0 0.0
        %504 = vmatpush.msra.mxu0 0.0
        %505 = vmatpush.msra.mxu0 0.0
        %506 = vmatpush.msra.mxu0 0.0
        %507 = vmatpush.msra.mxu0 0.0
        %508 = vmatpush.msra.mxu0 0.0
        %509 = vmatpush.msra.mxu0 0.0
        %510 = vmatpush.msra.mxu0 0.0
        %511 = vmatpush.msra.mxu0 0.0
        %512 = vmatpush.msra.mxu0 0.0
        %513 = vmatpush.msra.mxu0 0.0
        %v514 = vand.u32 %v362, 4294901760
        %v515 = vsub.f32 %v362, %v514
        %v516 = vand.u32 %v515, 4294901760
        %517 = vmatpush.msra.mxu0 %v516
        %v518 = vand.u32 %v360, 4294901760
        %v519 = vsub.f32 %v360, %v518
        %v520 = vand.u32 %v519, 4294901760
        %521 = vmatpush.msra.mxu0 %v520
        %v522 = vand.u32 %v358, 4294901760
        %v523 = vsub.f32 %v358, %v522
        %v524 = vand.u32 %v523, 4294901760
        %525 = vmatpush.msra.mxu0 %v524
        %v526 = vand.u32 %v356, 4294901760
        %v527 = vsub.f32 %v356, %v526
        %v528 = vand.u32 %v527, 4294901760
        %529 = vmatpush.msra.mxu0 %v528
        %v530 = vand.u32 %v373, 4294901760
        %531 = vmatmul.f32.gmra.mxu0 %v530
        %v532 = vpop.f32.mrf.mxu0
        %v533 = vadd.f32 %v500, %v532
        %534 = vdwg.mxu0
        %535 = vmatpush.msra.mxu0 0.0
        %536 = vmatpush.msra.mxu0 0.0
        %537 = vmatpush.msra.mxu0 0.0
        %538 = vmatpush.msra.mxu0 0.0
        %539 = vmatpush.msra.mxu0 0.0
        %540 = vmatpush.msra.mxu0 0.0
        %541 = vmatpush.msra.mxu0 0.0
        %542 = vmatpush.msra.mxu0 0.0
        %543 = vmatpush.msra.mxu0 0.0
        %544 = vmatpush.msra.mxu0 0.0
        %545 = vmatpush.msra.mxu0 0.0
        %546 = vmatpush.msra.mxu0 0.0
        %v547 = vand.u32 %v362, 4294901760
        %548 = vmatpush.msra.mxu0 %v547
        %v549 = vand.u32 %v360, 4294901760
        %550 = vmatpush.msra.mxu0 %v549
        %v551 = vand.u32 %v358, 4294901760
        %552 = vmatpush.msra.mxu0 %v551
        %v553 = vand.u32 %v356, 4294901760
        %554 = vmatpush.msra.mxu0 %v553
        %v555 = vand.u32 %v373, 4294901760
        %556 = vmatmul.f32.gmra.mxu0 %v555
        %v557 = vpop.f32.mrf.mxu0
        %v558 = vadd.f32 %v533, %v557
        %559 = vdwg.mxu0
        %560 = vmatpush.msra.mxu0 0.0
        %561 = vmatpush.msra.mxu0 0.0
        %562 = vmatpush.msra.mxu0 0.0
        %563 = vmatpush.msra.mxu0 0.0
        %564 = vmatpush.msra.mxu0 0.0
        %565 = vmatpush.msra.mxu0 0.0
        %566 = vmatpush.msra.mxu0 0.0
        %567 = vmatpush.msra.mxu0 0.0
        %568 = vmatpush.msra.mxu0 0.0
        %569 = vmatpush.msra.mxu0 0.0
        %570 = vmatpush.msra.mxu0 0.0
        %571 = vmatpush.msra.mxu0 0.0
        %v572 = vand.u32 %v363, 4294901760
        %573 = vmatpush.msra.mxu0 %v572
        %v574 = vand.u32 %v361, 4294901760
        %575 = vmatpush.msra.mxu0 %v574
        %v576 = vand.u32 %v359, 4294901760
        %577 = vmatpush.msra.mxu0 %v576
        %v578 = vand.u32 %v357, 4294901760
        %579 = vmatpush.msra.mxu0 %v578
        %v580 = vand.u32 %v373, 4294901760
        %v581 = vsub.f32 %v373, %v580
        %v582 = vand.u32 %v581, 4294901760
        %v583 = vsub.f32 %v581, %v582
        %v584 = vand.u32 %v583, 4294901760
        %585 = vmatmul.f32.gmra.mxu0 %v584
        %v586 = vpop.f32.mrf.mxu0
        %v587 = vadd.f32 %v369, %v586
        %588 = vdwg.mxu0
        %589 = vmatpush.msra.mxu0 0.0
        %590 = vmatpush.msra.mxu0 0.0
        %591 = vmatpush.msra.mxu0 0.0
        %592 = vmatpush.msra.mxu0 0.0
        %593 = vmatpush.msra.mxu0 0.0
        %594 = vmatpush.msra.mxu0 0.0
        %595 = vmatpush.msra.mxu0 0.0
        %596 = vmatpush.msra.mxu0 0.0
        %597 = vmatpush.msra.mxu0 0.0
        %598 = vmatpush.msra.mxu0 0.0
        %599 = vmatpush.msra.mxu0 0.0
        %600 = vmatpush.msra.mxu0 0.0
        %v601 = vand.u32 %v363, 4294901760
        %v602 = vsub.f32 %v363, %v601
        %v603 = vand.u32 %v602, 4294901760
        %v604 = vsub.f32 %v602, %v603
        %v605 = vand.u32 %v604, 4294901760
        %606 = vmatpush.msra.mxu0 %v605
        %v607 = vand.u32 %v361, 4294901760
        %v608 = vsub.f32 %v361, %v607
        %v609 = vand.u32 %v608, 4294901760
        %v610 = vsub.f32 %v608, %v609
        %v611 = vand.u32 %v610, 4294901760
        %612 = vmatpush.msra.mxu0 %v611
        %v613 = vand.u32 %v359, 4294901760
        %v614 = vsub.f32 %v359, %v613
        %v615 = vand.u32 %v614, 4294901760
        %v616 = vsub.f32 %v614, %v615
        %v617 = vand.u32 %v616, 4294901760
        %618 = vmatpush.msra.mxu0 %v617
        %v619 = vand.u32 %v357, 4294901760
        %v620 = vsub.f32 %v357, %v619
        %v621 = vand.u32 %v620, 4294901760
        %v622 = vsub.f32 %v620, %v621
        %v623 = vand.u32 %v622, 4294901760
        %624 = vmatpush.msra.mxu0 %v623
        %v625 = vand.u32 %v373, 4294901760
        %626 = vmatmul.f32.gmra.mxu0 %v625
        %v627 = vpop.f32.mrf.mxu0
        %v628 = vadd.f32 %v587, %v627
        %629 = vdwg.mxu0
        %630 = vmatpush.msra.mxu0 0.0
        %631 = vmatpush.msra.mxu0 0.0
        %632 = vmatpush.msra.mxu0 0.0
        %633 = vmatpush.msra.mxu0 0.0
        %634 = vmatpush.msra.mxu0 0.0
        %635 = vmatpush.msra.mxu0 0.0
        %636 = vmatpush.msra.mxu0 0.0
        %637 = vmatpush.msra.mxu0 0.0
        %638 = vmatpush.msra.mxu0 0.0
        %639 = vmatpush.msra.mxu0 0.0
        %640 = vmatpush.msra.mxu0 0.0
        %641 = vmatpush.msra.mxu0 0.0
        %v642 = vand.u32 %v363, 4294901760
        %v643 = vsub.f32 %v363, %v642
        %644 = vmatpush.msra.mxu0 %v643
        %v645 = vand.u32 %v361, 4294901760
        %v646 = vsub.f32 %v361, %v645
        %647 = vmatpush.msra.mxu0 %v646
        %v648 = vand.u32 %v359, 4294901760
        %v649 = vsub.f32 %v359, %v648
        %650 = vmatpush.msra.mxu0 %v649
        %v651 = vand.u32 %v357, 4294901760
        %v652 = vsub.f32 %v357, %v651
        %653 = vmatpush.msra.mxu0 %v652
        %v654 = vand.u32 %v373, 4294901760
        %v655 = vsub.f32 %v373, %v654
        %656 = vmatmul.f32.gmra.mxu0 %v655
        %v657 = vpop.f32.mrf.mxu0
        %v658 = vadd.f32 %v628, %v657
        %659 = vdwg.mxu0
        %660 = vmatpush.msra.mxu0 0.0
        %661 = vmatpush.msra.mxu0 0.0
        %662 = vmatpush.msra.mxu0 0.0
        %663 = vmatpush.msra.mxu0 0.0
        %664 = vmatpush.msra.mxu0 0.0
        %665 = vmatpush.msra.mxu0 0.0
        %666 = vmatpush.msra.mxu0 0.0
        %667 = vmatpush.msra.mxu0 0.0
        %668 = vmatpush.msra.mxu0 0.0
        %669 = vmatpush.msra.mxu0 0.0
        %670 = vmatpush.msra.mxu0 0.0
        %671 = vmatpush.msra.mxu0 0.0
        %v672 = vand.u32 %v363, 4294901760
        %673 = vmatpush.msra.mxu0 %v672
        %v674 = vand.u32 %v361, 4294901760
        %675 = vmatpush.msra.mxu0 %v674
        %v676 = vand.u32 %v359, 4294901760
        %677 = vmatpush.msra.mxu0 %v676
        %v678 = vand.u32 %v357, 4294901760
        %679 = vmatpush.msra.mxu0 %v678
        %v680 = vand.u32 %v373, 4294901760
        %v681 = vsub.f32 %v373, %v680
        %v682 = vand.u32 %v681, 4294901760
        %683 = vmatmul.f32.gmra.mxu0 %v682
        %v684 = vpop.f32.mrf.mxu0
        %v685 = vadd.f32 %v658, %v684
        %686 = vdwg.mxu0
        %687 = vmatpush.msra.mxu0 0.0
        %688 = vmatpush.msra.mxu0 0.0
        %689 = vmatpush.msra.mxu0 0.0
        %690 = vmatpush.msra.mxu0 0.0
        %691 = vmatpush.msra.mxu0 0.0
        %692 = vmatpush.msra.mxu0 0.0
        %693 = vmatpush.msra.mxu0 0.0
        %694 = vmatpush.msra.mxu0 0.0
        %695 = vmatpush.msra.mxu0 0.0
        %696 = vmatpush.msra.mxu0 0.0
        %697 = vmatpush.msra.mxu0 0.0
        %698 = vmatpush.msra.mxu0 0.0
        %v699 = vand.u32 %v363, 4294901760
        %v700 = vsub.f32 %v363, %v699
        %v701 = vand.u32 %v700, 4294901760
        %702 = vmatpush.msra.mxu0 %v701
        %v703 = vand.u32 %v361, 4294901760
        %v704 = vsub.f32 %v361, %v703
        %v705 = vand.u32 %v704, 4294901760
        %706 = vmatpush.msra.mxu0 %v705
        %v707 = vand.u32 %v359, 4294901760
        %v708 = vsub.f32 %v359, %v707
        %v709 = vand.u32 %v708, 4294901760
        %710 = vmatpush.msra.mxu0 %v709
        %v711 = vand.u32 %v357, 4294901760
        %v712 = vsub.f32 %v357, %v711
        %v713 = vand.u32 %v712, 4294901760
        %714 = vmatpush.msra.mxu0 %v713
        %v715 = vand.u32 %v373, 4294901760
        %716 = vmatmul.f32.gmra.mxu0 %v715
        %v717 = vpop.f32.mrf.mxu0
        %v718 = vadd.f32 %v685, %v717
        %719 = vdwg.mxu0
        %720 = vmatpush.msra.mxu0 0.0
        %721 = vmatpush.msra.mxu0 0.0
        %722 = vmatpush.msra.mxu0 0.0
        %723 = vmatpush.msra.mxu0 0.0
        %724 = vmatpush.msra.mxu0 0.0
        %725 = vmatpush.msra.mxu0 0.0
        %726 = vmatpush.msra.mxu0 0.0
        %727 = vmatpush.msra.mxu0 0.0
        %728 = vmatpush.msra.mxu0 0.0
        %729 = vmatpush.msra.mxu0 0.0
        %730 = vmatpush.msra.mxu0 0.0
        %731 = vmatpush.msra.mxu0 0.0
        %v732 = vand.u32 %v363, 4294901760
        %733 = vmatpush.msra.mxu0 %v732
        %v734 = vand.u32 %v361, 4294901760
        %735 = vmatpush.msra.mxu0 %v734
        %v736 = vand.u32 %v359, 4294901760
        %737 = vmatpush.msra.mxu0 %v736
        %v738 = vand.u32 %v357, 4294901760
        %739 = vmatpush.msra.mxu0 %v738
        %v740 = vand.u32 %v373, 4294901760
        %741 = vmatmul.f32.gmra.mxu0 %v740
        %v742 = vpop.f32.mrf.mxu0
        %v743 = vadd.f32 %v718, %v742
        %744 = vdwg.mxu0
        %v745 = vld [vmem:[%s3] sm:$0xff]
        %v746 = vld [vmem:[%s3 + $0x8] sm:$0xff]
        %v747 = vld [vmem:[%s3 + $0x10] sm:$0xff]
        %v748 = vld [vmem:[%s3 + $0x18] sm:$0xff]
        %v749 = vld [vmem:[%s4] sm:$0xff]
        %v750 = vld [vmem:[%s4 + $0x8] sm:$0xff]
        %v751 = vld [vmem:[%s4 + $0x10] sm:$0xff]
        %v752 = vld [vmem:[%s4 + $0x18] sm:$0xff]
        %754 = vset.pattern.permute.xlu0 0
        %755 = vperm.xlu0 %754, %v749
        %v756 = vpop.permute.xlu0 %755
        %759 = vset.pattern.permute.xlu0 0
        %760 = vperm.xlu0 %759, %v750
        %v761 = vpop.permute.xlu0 %760
        %764 = vset.pattern.permute.xlu0 0
        %765 = vperm.xlu0 %764, %v751
        %v766 = vpop.permute.xlu0 %765
        %769 = vset.pattern.permute.xlu0 0
        %770 = vperm.xlu0 %769, %v752
        %v771 = vpop.permute.xlu0 %770
        %v774 = vsel %vm371, %v745, 0
        %v777 = vsel %vm371, %v746, 0
        %v780 = vsel %vm371, %v747, 0
        %v783 = vsel %vm371, %v748, 0
        %785 = vmatpush.msra.mxu0 0.0
        %786 = vmatpush.msra.mxu0 0.0
        %787 = vmatpush.msra.mxu0 0.0
        %788 = vmatpush.msra.mxu0 0.0
        %789 = vmatpush.msra.mxu0 0.0
        %790 = vmatpush.msra.mxu0 0.0
        %791 = vmatpush.msra.mxu0 0.0
        %792 = vmatpush.msra.mxu0 0.0
        %793 = vmatpush.msra.mxu0 0.0
        %794 = vmatpush.msra.mxu0 0.0
        %795 = vmatpush.msra.mxu0 0.0
        %796 = vmatpush.msra.mxu0 0.0
        %v797 = vand.u32 %v362, 4294901760
        %798 = vmatpush.msra.mxu0 %v797
        %v799 = vand.u32 %v360, 4294901760
        %800 = vmatpush.msra.mxu0 %v799
        %v801 = vand.u32 %v358, 4294901760
        %802 = vmatpush.msra.mxu0 %v801
        %v803 = vand.u32 %v356, 4294901760
        %804 = vmatpush.msra.mxu0 %v803
        %v805 = vand.u32 %v774, 4294901760
        %v806 = vsub.f32 %v774, %v805
        %v807 = vand.u32 %v806, 4294901760
        %v808 = vsub.f32 %v806, %v807
        %v809 = vand.u32 %v808, 4294901760
        %810 = vmatmul.f32.gmra.mxu0 %v809
        %v811 = vpop.f32.mrf.mxu0
        %v812 = vadd.f32 %v756, %v811
        %v813 = vand.u32 %v777, 4294901760
        %v814 = vsub.f32 %v777, %v813
        %v815 = vand.u32 %v814, 4294901760
        %v816 = vsub.f32 %v814, %v815
        %v817 = vand.u32 %v816, 4294901760
        %818 = vmatmul.f32.gmra.mxu0 %v817
        %v819 = vpop.f32.mrf.mxu0
        %v820 = vadd.f32 %v761, %v819
        %v821 = vand.u32 %v780, 4294901760
        %v822 = vsub.f32 %v780, %v821
        %v823 = vand.u32 %v822, 4294901760
        %v824 = vsub.f32 %v822, %v823
        %v825 = vand.u32 %v824, 4294901760
        %826 = vmatmul.f32.gmra.mxu0 %v825
        %v827 = vpop.f32.mrf.mxu0
        %v828 = vadd.f32 %v766, %v827
        %v829 = vand.u32 %v783, 4294901760
        %v830 = vsub.f32 %v783, %v829
        %v831 = vand.u32 %v830, 4294901760
        %v832 = vsub.f32 %v830, %v831
        %v833 = vand.u32 %v832, 4294901760
        %834 = vmatmul.f32.gmra.mxu0 %v833
        %v835 = vpop.f32.mrf.mxu0
        %v836 = vadd.f32 %v771, %v835
        %837 = vdwg.mxu0
        %838 = vmatpush.msra.mxu0 0.0
        %839 = vmatpush.msra.mxu0 0.0
        %840 = vmatpush.msra.mxu0 0.0
        %841 = vmatpush.msra.mxu0 0.0
        %842 = vmatpush.msra.mxu0 0.0
        %843 = vmatpush.msra.mxu0 0.0
        %844 = vmatpush.msra.mxu0 0.0
        %845 = vmatpush.msra.mxu0 0.0
        %846 = vmatpush.msra.mxu0 0.0
        %847 = vmatpush.msra.mxu0 0.0
        %848 = vmatpush.msra.mxu0 0.0
        %849 = vmatpush.msra.mxu0 0.0
        %v850 = vand.u32 %v362, 4294901760
        %v851 = vsub.f32 %v362, %v850
        %v852 = vand.u32 %v851, 4294901760
        %v853 = vsub.f32 %v851, %v852
        %v854 = vand.u32 %v853, 4294901760
        %855 = vmatpush.msra.mxu0 %v854
        %v856 = vand.u32 %v360, 4294901760
        %v857 = vsub.f32 %v360, %v856
        %v858 = vand.u32 %v857, 4294901760
        %v859 = vsub.f32 %v857, %v858
        %v860 = vand.u32 %v859, 4294901760
        %861 = vmatpush.msra.mxu0 %v860
        %v862 = vand.u32 %v358, 4294901760
        %v863 = vsub.f32 %v358, %v862
        %v864 = vand.u32 %v863, 4294901760
        %v865 = vsub.f32 %v863, %v864
        %v866 = vand.u32 %v865, 4294901760
        %867 = vmatpush.msra.mxu0 %v866
        %v868 = vand.u32 %v356, 4294901760
        %v869 = vsub.f32 %v356, %v868
        %v870 = vand.u32 %v869, 4294901760
        %v871 = vsub.f32 %v869, %v870
        %v872 = vand.u32 %v871, 4294901760
        %873 = vmatpush.msra.mxu0 %v872
        %v874 = vand.u32 %v774, 4294901760
        %875 = vmatmul.f32.gmra.mxu0 %v874
        %v876 = vpop.f32.mrf.mxu0
        %v877 = vadd.f32 %v812, %v876
        %v878 = vand.u32 %v777, 4294901760
        %879 = vmatmul.f32.gmra.mxu0 %v878
        %v880 = vpop.f32.mrf.mxu0
        %v881 = vadd.f32 %v820, %v880
        %v882 = vand.u32 %v780, 4294901760
        %883 = vmatmul.f32.gmra.mxu0 %v882
        %v884 = vpop.f32.mrf.mxu0
        %v885 = vadd.f32 %v828, %v884
        %v886 = vand.u32 %v783, 4294901760
        %887 = vmatmul.f32.gmra.mxu0 %v886
        %v888 = vpop.f32.mrf.mxu0
        %v889 = vadd.f32 %v836, %v888
        %890 = vdwg.mxu0
        %891 = vmatpush.msra.mxu0 0.0
        %892 = vmatpush.msra.mxu0 0.0
        %893 = vmatpush.msra.mxu0 0.0
        %894 = vmatpush.msra.mxu0 0.0
        %895 = vmatpush.msra.mxu0 0.0
        %896 = vmatpush.msra.mxu0 0.0
        %897 = vmatpush.msra.mxu0 0.0
        %898 = vmatpush.msra.mxu0 0.0
        %899 = vmatpush.msra.mxu0 0.0
        %900 = vmatpush.msra.mxu0 0.0
        %901 = vmatpush.msra.mxu0 0.0
        %902 = vmatpush.msra.mxu0 0.0
        %v903 = vand.u32 %v362, 4294901760
        %v904 = vsub.f32 %v362, %v903
        %905 = vmatpush.msra.mxu0 %v904
        %v906 = vand.u32 %v360, 4294901760
        %v907 = vsub.f32 %v360, %v906
        %908 = vmatpush.msra.mxu0 %v907
        %v909 = vand.u32 %v358, 4294901760
        %v910 = vsub.f32 %v358, %v909
        %911 = vmatpush.msra.mxu0 %v910
        %v912 = vand.u32 %v356, 4294901760
        %v913 = vsub.f32 %v356, %v912
        %914 = vmatpush.msra.mxu0 %v913
        %v915 = vand.u32 %v774, 4294901760
        %v916 = vsub.f32 %v774, %v915
        %917 = vmatmul.f32.gmra.mxu0 %v916
        %v918 = vpop.f32.mrf.mxu0
        %v919 = vadd.f32 %v877, %v918
        %v920 = vand.u32 %v777, 4294901760
        %v921 = vsub.f32 %v777, %v920
        %922 = vmatmul.f32.gmra.mxu0 %v921
        %v923 = vpop.f32.mrf.mxu0
        %v924 = vadd.f32 %v881, %v923
        %v925 = vand.u32 %v780, 4294901760
        %v926 = vsub.f32 %v780, %v925
        %927 = vmatmul.f32.gmra.mxu0 %v926
        %v928 = vpop.f32.mrf.mxu0
        %v929 = vadd.f32 %v885, %v928
        %v930 = vand.u32 %v783, 4294901760
        %v931 = vsub.f32 %v783, %v930
        %932 = vmatmul.f32.gmra.mxu0 %v931
        %v933 = vpop.f32.mrf.mxu0
        %v934 = vadd.f32 %v889, %v933
        %935 = vdwg.mxu0
        %936 = vmatpush.msra.mxu0 0.0
        %937 = vmatpush.msra.mxu0 0.0
        %938 = vmatpush.msra.mxu0 0.0
        %939 = vmatpush.msra.mxu0 0.0
        %940 = vmatpush.msra.mxu0 0.0
        %941 = vmatpush.msra.mxu0 0.0
        %942 = vmatpush.msra.mxu0 0.0
        %943 = vmatpush.msra.mxu0 0.0
        %944 = vmatpush.msra.mxu0 0.0
        %945 = vmatpush.msra.mxu0 0.0
        %946 = vmatpush.msra.mxu0 0.0
        %947 = vmatpush.msra.mxu0 0.0
        %v948 = vand.u32 %v362, 4294901760
        %949 = vmatpush.msra.mxu0 %v948
        %v950 = vand.u32 %v360, 4294901760
        %951 = vmatpush.msra.mxu0 %v950
        %v952 = vand.u32 %v358, 4294901760
        %953 = vmatpush.msra.mxu0 %v952
        %v954 = vand.u32 %v356, 4294901760
        %955 = vmatpush.msra.mxu0 %v954
        %v956 = vand.u32 %v774, 4294901760
        %v957 = vsub.f32 %v774, %v956
        %v958 = vand.u32 %v957, 4294901760
        %959 = vmatmul.f32.gmra.mxu0 %v958
        %v960 = vpop.f32.mrf.mxu0
        %v961 = vadd.f32 %v919, %v960
        %v962 = vand.u32 %v777, 4294901760
        %v963 = vsub.f32 %v777, %v962
        %v964 = vand.u32 %v963, 4294901760
        %965 = vmatmul.f32.gmra.mxu0 %v964
        %v966 = vpop.f32.mrf.mxu0
        %v967 = vadd.f32 %v924, %v966
        %v968 = vand.u32 %v780, 4294901760
        %v969 = vsub.f32 %v780, %v968
        %v970 = vand.u32 %v969, 4294901760
        %971 = vmatmul.f32.gmra.mxu0 %v970
        %v972 = vpop.f32.mrf.mxu0
        %v973 = vadd.f32 %v929, %v972
        %v974 = vand.u32 %v783, 4294901760
        %v975 = vsub.f32 %v783, %v974
        %v976 = vand.u32 %v975, 4294901760
        %977 = vmatmul.f32.gmra.mxu0 %v976
        %v978 = vpop.f32.mrf.mxu0
        %v979 = vadd.f32 %v934, %v978
        %980 = vdwg.mxu0
        %981 = vmatpush.msra.mxu0 0.0
        %982 = vmatpush.msra.mxu0 0.0
        %983 = vmatpush.msra.mxu0 0.0
        %984 = vmatpush.msra.mxu0 0.0
        %985 = vmatpush.msra.mxu0 0.0
        %986 = vmatpush.msra.mxu0 0.0
        %987 = vmatpush.msra.mxu0 0.0
        %988 = vmatpush.msra.mxu0 0.0
        %989 = vmatpush.msra.mxu0 0.0
        %990 = vmatpush.msra.mxu0 0.0
        %991 = vmatpush.msra.mxu0 0.0
        %992 = vmatpush.msra.mxu0 0.0
        %v993 = vand.u32 %v362, 4294901760
        %v994 = vsub.f32 %v362, %v993
        %v995 = vand.u32 %v994, 4294901760
        %996 = vmatpush.msra.mxu0 %v995
        %v997 = vand.u32 %v360, 4294901760
        %v998 = vsub.f32 %v360, %v997
        %v999 = vand.u32 %v998, 4294901760
        %1000 = vmatpush.msra.mxu0 %v999
        %v1001 = vand.u32 %v358, 4294901760
        %v1002 = vsub.f32 %v358, %v1001
        %v1003 = vand.u32 %v1002, 4294901760
        %1004 = vmatpush.msra.mxu0 %v1003
        %v1005 = vand.u32 %v356, 4294901760
        %v1006 = vsub.f32 %v356, %v1005
        %v1007 = vand.u32 %v1006, 4294901760
        %1008 = vmatpush.msra.mxu0 %v1007
        %v1009 = vand.u32 %v774, 4294901760
        %1010 = vmatmul.f32.gmra.mxu0 %v1009
        %v1011 = vpop.f32.mrf.mxu0
        %v1012 = vadd.f32 %v961, %v1011
        %v1013 = vand.u32 %v777, 4294901760
        %1014 = vmatmul.f32.gmra.mxu0 %v1013
        %v1015 = vpop.f32.mrf.mxu0
        %v1016 = vadd.f32 %v967, %v1015
        %v1017 = vand.u32 %v780, 4294901760
        %1018 = vmatmul.f32.gmra.mxu0 %v1017
        %v1019 = vpop.f32.mrf.mxu0
        %v1020 = vadd.f32 %v973, %v1019
        %v1021 = vand.u32 %v783, 4294901760
        %1022 = vmatmul.f32.gmra.mxu0 %v1021
        %v1023 = vpop.f32.mrf.mxu0
        %v1024 = vadd.f32 %v979, %v1023
        %1025 = vdwg.mxu0
        %1026 = vmatpush.msra.mxu0 0.0
        %1027 = vmatpush.msra.mxu0 0.0
        %1028 = vmatpush.msra.mxu0 0.0
        %1029 = vmatpush.msra.mxu0 0.0
        %1030 = vmatpush.msra.mxu0 0.0
        %1031 = vmatpush.msra.mxu0 0.0
        %1032 = vmatpush.msra.mxu0 0.0
        %1033 = vmatpush.msra.mxu0 0.0
        %1034 = vmatpush.msra.mxu0 0.0
        %1035 = vmatpush.msra.mxu0 0.0
        %1036 = vmatpush.msra.mxu0 0.0
        %1037 = vmatpush.msra.mxu0 0.0
        %v1038 = vand.u32 %v362, 4294901760
        %1039 = vmatpush.msra.mxu0 %v1038
        %v1040 = vand.u32 %v360, 4294901760
        %1041 = vmatpush.msra.mxu0 %v1040
        %v1042 = vand.u32 %v358, 4294901760
        %1043 = vmatpush.msra.mxu0 %v1042
        %v1044 = vand.u32 %v356, 4294901760
        %1045 = vmatpush.msra.mxu0 %v1044
        %v1046 = vand.u32 %v774, 4294901760
        %1047 = vmatmul.f32.gmra.mxu0 %v1046
        %v1048 = vpop.f32.mrf.mxu0
        %v1049 = vadd.f32 %v1012, %v1048
        %v1050 = vand.u32 %v777, 4294901760
        %1051 = vmatmul.f32.gmra.mxu0 %v1050
        %v1052 = vpop.f32.mrf.mxu0
        %v1053 = vadd.f32 %v1016, %v1052
        %v1054 = vand.u32 %v780, 4294901760
        %1055 = vmatmul.f32.gmra.mxu0 %v1054
        %v1056 = vpop.f32.mrf.mxu0
        %v1057 = vadd.f32 %v1020, %v1056
        %v1058 = vand.u32 %v783, 4294901760
        %1059 = vmatmul.f32.gmra.mxu0 %v1058
        %v1060 = vpop.f32.mrf.mxu0
        %v1061 = vadd.f32 %v1024, %v1060
        %1062 = vdwg.mxu0
        %1063 = vmatpush.msra.mxu0 0.0
        %1064 = vmatpush.msra.mxu0 0.0
        %1065 = vmatpush.msra.mxu0 0.0
        %1066 = vmatpush.msra.mxu0 0.0
        %1067 = vmatpush.msra.mxu0 0.0
        %1068 = vmatpush.msra.mxu0 0.0
        %1069 = vmatpush.msra.mxu0 0.0
        %1070 = vmatpush.msra.mxu0 0.0
        %1071 = vmatpush.msra.mxu0 0.0
        %1072 = vmatpush.msra.mxu0 0.0
        %1073 = vmatpush.msra.mxu0 0.0
        %1074 = vmatpush.msra.mxu0 0.0
        %v1075 = vand.u32 %v363, 4294901760
        %1076 = vmatpush.msra.mxu0 %v1075
        %v1077 = vand.u32 %v361, 4294901760
        %1078 = vmatpush.msra.mxu0 %v1077
        %v1079 = vand.u32 %v359, 4294901760
        %1080 = vmatpush.msra.mxu0 %v1079
        %v1081 = vand.u32 %v357, 4294901760
        %1082 = vmatpush.msra.mxu0 %v1081
        %v1083 = vand.u32 %v774, 4294901760
        %v1084 = vsub.f32 %v774, %v1083
        %v1085 = vand.u32 %v1084, 4294901760
        %v1086 = vsub.f32 %v1084, %v1085
        %v1087 = vand.u32 %v1086, 4294901760
        %1088 = vmatmul.f32.gmra.mxu0 %v1087
        %v1089 = vpop.f32.mrf.mxu0
        %v1090 = vadd.f32 %v756, %v1089
        %v1091 = vand.u32 %v777, 4294901760
        %v1092 = vsub.f32 %v777, %v1091
        %v1093 = vand.u32 %v1092, 4294901760
        %v1094 = vsub.f32 %v1092, %v1093
        %v1095 = vand.u32 %v1094, 4294901760
        %1096 = vmatmul.f32.gmra.mxu0 %v1095
        %v1097 = vpop.f32.mrf.mxu0
        %v1098 = vadd.f32 %v761, %v1097
        %v1099 = vand.u32 %v780, 4294901760
        %v1100 = vsub.f32 %v780, %v1099
        %v1101 = vand.u32 %v1100, 4294901760
        %v1102 = vsub.f32 %v1100, %v1101
        %v1103 = vand.u32 %v1102, 4294901760
        %1104 = vmatmul.f32.gmra.mxu0 %v1103
        %v1105 = vpop.f32.mrf.mxu0
        %v1106 = vadd.f32 %v766, %v1105
        %v1107 = vand.u32 %v783, 4294901760
        %v1108 = vsub.f32 %v783, %v1107
        %v1109 = vand.u32 %v1108, 4294901760
        %v1110 = vsub.f32 %v1108, %v1109
        %v1111 = vand.u32 %v1110, 4294901760
        %1112 = vmatmul.f32.gmra.mxu0 %v1111
        %v1113 = vpop.f32.mrf.mxu0
        %v1114 = vadd.f32 %v771, %v1113
        %1115 = vdwg.mxu0
        %1116 = vmatpush.msra.mxu0 0.0
        %1117 = vmatpush.msra.mxu0 0.0
        %1118 = vmatpush.msra.mxu0 0.0
        %1119 = vmatpush.msra.mxu0 0.0
        %1120 = vmatpush.msra.mxu0 0.0
        %1121 = vmatpush.msra.mxu0 0.0
        %1122 = vmatpush.msra.mxu0 0.0
        %1123 = vmatpush.msra.mxu0 0.0
        %1124 = vmatpush.msra.mxu0 0.0
        %1125 = vmatpush.msra.mxu0 0.0
        %1126 = vmatpush.msra.mxu0 0.0
        %1127 = vmatpush.msra.mxu0 0.0
        %v1128 = vand.u32 %v363, 4294901760
        %v1129 = vsub.f32 %v363, %v1128
        %v1130 = vand.u32 %v1129, 4294901760
        %v1131 = vsub.f32 %v1129, %v1130
        %v1132 = vand.u32 %v1131, 4294901760
        %1133 = vmatpush.msra.mxu0 %v1132
        %v1134 = vand.u32 %v361, 4294901760
        %v1135 = vsub.f32 %v361, %v1134
        %v1136 = vand.u32 %v1135, 4294901760
        %v1137 = vsub.f32 %v1135, %v1136
        %v1138 = vand.u32 %v1137, 4294901760
        %1139 = vmatpush.msra.mxu0 %v1138
        %v1140 = vand.u32 %v359, 4294901760
        %v1141 = vsub.f32 %v359, %v1140
        %v1142 = vand.u32 %v1141, 4294901760
        %v1143 = vsub.f32 %v1141, %v1142
        %v1144 = vand.u32 %v1143, 4294901760
        %1145 = vmatpush.msra.mxu0 %v1144
        %v1146 = vand.u32 %v357, 4294901760
        %v1147 = vsub.f32 %v357, %v1146
        %v1148 = vand.u32 %v1147, 4294901760
        %v1149 = vsub.f32 %v1147, %v1148
        %v1150 = vand.u32 %v1149, 4294901760
        %1151 = vmatpush.msra.mxu0 %v1150
        %v1152 = vand.u32 %v774, 4294901760
        %1153 = vmatmul.f32.gmra.mxu0 %v1152
        %v1154 = vpop.f32.mrf.mxu0
        %v1155 = vadd.f32 %v1090, %v1154
        %v1156 = vand.u32 %v777, 4294901760
        %1157 = vmatmul.f32.gmra.mxu0 %v1156
        %v1158 = vpop.f32.mrf.mxu0
        %v1159 = vadd.f32 %v1098, %v1158
        %v1160 = vand.u32 %v780, 4294901760
        %1161 = vmatmul.f32.gmra.mxu0 %v1160
        %v1162 = vpop.f32.mrf.mxu0
        %v1163 = vadd.f32 %v1106, %v1162
        %v1164 = vand.u32 %v783, 4294901760
        %1165 = vmatmul.f32.gmra.mxu0 %v1164
        %v1166 = vpop.f32.mrf.mxu0
        %v1167 = vadd.f32 %v1114, %v1166
        %1168 = vdwg.mxu0
        %1169 = vmatpush.msra.mxu0 0.0
        %1170 = vmatpush.msra.mxu0 0.0
        %1171 = vmatpush.msra.mxu0 0.0
        %1172 = vmatpush.msra.mxu0 0.0
        %1173 = vmatpush.msra.mxu0 0.0
        %1174 = vmatpush.msra.mxu0 0.0
        %1175 = vmatpush.msra.mxu0 0.0
        %1176 = vmatpush.msra.mxu0 0.0
        %1177 = vmatpush.msra.mxu0 0.0
        %1178 = vmatpush.msra.mxu0 0.0
        %1179 = vmatpush.msra.mxu0 0.0
        %1180 = vmatpush.msra.mxu0 0.0
        %v1181 = vand.u32 %v363, 4294901760
        %v1182 = vsub.f32 %v363, %v1181
        %1183 = vmatpush.msra.mxu0 %v1182
        %v1184 = vand.u32 %v361, 4294901760
        %v1185 = vsub.f32 %v361, %v1184
        %1186 = vmatpush.msra.mxu0 %v1185
        %v1187 = vand.u32 %v359, 4294901760
        %v1188 = vsub.f32 %v359, %v1187
        %1189 = vmatpush.msra.mxu0 %v1188
        %v1190 = vand.u32 %v357, 4294901760
        %v1191 = vsub.f32 %v357, %v1190
        %1192 = vmatpush.msra.mxu0 %v1191
        %v1193 = vand.u32 %v774, 4294901760
        %v1194 = vsub.f32 %v774, %v1193
        %1195 = vmatmul.f32.gmra.mxu0 %v1194
        %v1196 = vpop.f32.mrf.mxu0
        %v1197 = vadd.f32 %v1155, %v1196
        %v1198 = vand.u32 %v777, 4294901760
        %v1199 = vsub.f32 %v777, %v1198
        %1200 = vmatmul.f32.gmra.mxu0 %v1199
        %v1201 = vpop.f32.mrf.mxu0
        %v1202 = vadd.f32 %v1159, %v1201
        %v1203 = vand.u32 %v780, 4294901760
        %v1204 = vsub.f32 %v780, %v1203
        %1205 = vmatmul.f32.gmra.mxu0 %v1204
        %v1206 = vpop.f32.mrf.mxu0
        %v1207 = vadd.f32 %v1163, %v1206
        %v1208 = vand.u32 %v783, 4294901760
        %v1209 = vsub.f32 %v783, %v1208
        %1210 = vmatmul.f32.gmra.mxu0 %v1209
        %v1211 = vpop.f32.mrf.mxu0
        %v1212 = vadd.f32 %v1167, %v1211
        %1213 = vdwg.mxu0
        %1214 = vmatpush.msra.mxu0 0.0
        %1215 = vmatpush.msra.mxu0 0.0
        %1216 = vmatpush.msra.mxu0 0.0
        %1217 = vmatpush.msra.mxu0 0.0
        %1218 = vmatpush.msra.mxu0 0.0
        %1219 = vmatpush.msra.mxu0 0.0
        %1220 = vmatpush.msra.mxu0 0.0
        %1221 = vmatpush.msra.mxu0 0.0
        %1222 = vmatpush.msra.mxu0 0.0
        %1223 = vmatpush.msra.mxu0 0.0
        %1224 = vmatpush.msra.mxu0 0.0
        %1225 = vmatpush.msra.mxu0 0.0
        %v1226 = vand.u32 %v363, 4294901760
        %1227 = vmatpush.msra.mxu0 %v1226
        %v1228 = vand.u32 %v361, 4294901760
        %1229 = vmatpush.msra.mxu0 %v1228
        %v1230 = vand.u32 %v359, 4294901760
        %1231 = vmatpush.msra.mxu0 %v1230
        %v1232 = vand.u32 %v357, 4294901760
        %1233 = vmatpush.msra.mxu0 %v1232
        %v1234 = vand.u32 %v774, 4294901760
        %v1235 = vsub.f32 %v774, %v1234
        %v1236 = vand.u32 %v1235, 4294901760
        %1237 = vmatmul.f32.gmra.mxu0 %v1236
        %v1238 = vpop.f32.mrf.mxu0
        %v1239 = vadd.f32 %v1197, %v1238
        %v1240 = vand.u32 %v777, 4294901760
        %v1241 = vsub.f32 %v777, %v1240
        %v1242 = vand.u32 %v1241, 4294901760
        %1243 = vmatmul.f32.gmra.mxu0 %v1242
        %v1244 = vpop.f32.mrf.mxu0
        %v1245 = vadd.f32 %v1202, %v1244
        %v1246 = vand.u32 %v780, 4294901760
        %v1247 = vsub.f32 %v780, %v1246
        %v1248 = vand.u32 %v1247, 4294901760
        %1249 = vmatmul.f32.gmra.mxu0 %v1248
        %v1250 = vpop.f32.mrf.mxu0
        %v1251 = vadd.f32 %v1207, %v1250
        %v1252 = vand.u32 %v783, 4294901760
        %v1253 = vsub.f32 %v783, %v1252
        %v1254 = vand.u32 %v1253, 4294901760
        %1255 = vmatmul.f32.gmra.mxu0 %v1254
        %v1256 = vpop.f32.mrf.mxu0
        %v1257 = vadd.f32 %v1212, %v1256
        %1258 = vdwg.mxu0
        %1259 = vmatpush.msra.mxu0 0.0
        %1260 = vmatpush.msra.mxu0 0.0
        %1261 = vmatpush.msra.mxu0 0.0
        %1262 = vmatpush.msra.mxu0 0.0
        %1263 = vmatpush.msra.mxu0 0.0
        %1264 = vmatpush.msra.mxu0 0.0
        %1265 = vmatpush.msra.mxu0 0.0
        %1266 = vmatpush.msra.mxu0 0.0
        %1267 = vmatpush.msra.mxu0 0.0
        %1268 = vmatpush.msra.mxu0 0.0
        %1269 = vmatpush.msra.mxu0 0.0
        %1270 = vmatpush.msra.mxu0 0.0
        %v1271 = vand.u32 %v363, 4294901760
        %v1272 = vsub.f32 %v363, %v1271
        %v1273 = vand.u32 %v1272, 4294901760
        %1274 = vmatpush.msra.mxu0 %v1273
        %v1275 = vand.u32 %v361, 4294901760
        %v1276 = vsub.f32 %v361, %v1275
        %v1277 = vand.u32 %v1276, 4294901760
        %1278 = vmatpush.msra.mxu0 %v1277
        %v1279 = vand.u32 %v359, 4294901760
        %v1280 = vsub.f32 %v359, %v1279
        %v1281 = vand.u32 %v1280, 4294901760
        %1282 = vmatpush.msra.mxu0 %v1281
        %v1283 = vand.u32 %v357, 4294901760
        %v1284 = vsub.f32 %v357, %v1283
        %v1285 = vand.u32 %v1284, 4294901760
        %1286 = vmatpush.msra.mxu0 %v1285
        %v1287 = vand.u32 %v774, 4294901760
        %1288 = vmatmul.f32.gmra.mxu0 %v1287
        %v1289 = vpop.f32.mrf.mxu0
        %v1290 = vadd.f32 %v1239, %v1289
        %v1291 = vand.u32 %v777, 4294901760
        %1292 = vmatmul.f32.gmra.mxu0 %v1291
        %v1293 = vpop.f32.mrf.mxu0
        %v1294 = vadd.f32 %v1245, %v1293
        %v1295 = vand.u32 %v780, 4294901760
        %1296 = vmatmul.f32.gmra.mxu0 %v1295
        %v1297 = vpop.f32.mrf.mxu0
        %v1298 = vadd.f32 %v1251, %v1297
        %v1299 = vand.u32 %v783, 4294901760
        %1300 = vmatmul.f32.gmra.mxu0 %v1299
        %v1301 = vpop.f32.mrf.mxu0
        %v1302 = vadd.f32 %v1257, %v1301
        %1303 = vdwg.mxu0
        %1304 = vmatpush.msra.mxu0 0.0
        %1305 = vmatpush.msra.mxu0 0.0
        %1306 = vmatpush.msra.mxu0 0.0
        %1307 = vmatpush.msra.mxu0 0.0
        %1308 = vmatpush.msra.mxu0 0.0
        %1309 = vmatpush.msra.mxu0 0.0
        %1310 = vmatpush.msra.mxu0 0.0
        %1311 = vmatpush.msra.mxu0 0.0
        %1312 = vmatpush.msra.mxu0 0.0
        %1313 = vmatpush.msra.mxu0 0.0
        %1314 = vmatpush.msra.mxu0 0.0
        %1315 = vmatpush.msra.mxu0 0.0
        %v1316 = vand.u32 %v363, 4294901760
        %1317 = vmatpush.msra.mxu0 %v1316
        %v1318 = vand.u32 %v361, 4294901760
        %1319 = vmatpush.msra.mxu0 %v1318
        %v1320 = vand.u32 %v359, 4294901760
        %1321 = vmatpush.msra.mxu0 %v1320
        %v1322 = vand.u32 %v357, 4294901760
        %1323 = vmatpush.msra.mxu0 %v1322
        %v1324 = vand.u32 %v774, 4294901760
        %1325 = vmatmul.f32.gmra.mxu0 %v1324
        %v1326 = vpop.f32.mrf.mxu0
        %v1327 = vadd.f32 %v1290, %v1326
        %v1328 = vand.u32 %v777, 4294901760
        %1329 = vmatmul.f32.gmra.mxu0 %v1328
        %v1330 = vpop.f32.mrf.mxu0
        %v1331 = vadd.f32 %v1294, %v1330
        %v1332 = vand.u32 %v780, 4294901760
        %1333 = vmatmul.f32.gmra.mxu0 %v1332
        %v1334 = vpop.f32.mrf.mxu0
        %v1335 = vadd.f32 %v1298, %v1334
        %v1336 = vand.u32 %v783, 4294901760
        %1337 = vmatmul.f32.gmra.mxu0 %v1336
        %v1338 = vpop.f32.mrf.mxu0
        %v1339 = vadd.f32 %v1302, %v1338
        %1340 = vdwg.mxu0
        %v1343 = vrot.slane %v743, 4
        %vm1344 = vcmask 1043456
        %v1345 = vsel %vm1344, %v558, %v1343
        %1347 = vst [vmem:[%s324] sm:$0xff] %v1345
        %1348 = vst.sshfl [vmem:[#allocation1] sm:$0xff pattern:$0x75316420] %v558
        %1349 = vst.sshfl [vmem:[#allocation1 + $0x8] sm:$0xff pattern:$0x75316420] %v743
        %s1350 = scalar_lea.vmem [#allocation1], 1
        %v1351 = vld [vmem:[%s1350] ss:$2 sm:$0xff]
        %1353 = vst [vmem:[%s331] sm:$0xff] %v1351
        %1354 = vxpose.xlu0.b32.start [1/16] %v1049, 128
        %1355 = vxpose.xlu0.b32.cont [2/16] %v1053, 128
        %1356 = vxpose.xlu0.b32.cont [3/16] %v1057, 128
        %1357 = vxpose.xlu0.b32.cont [4/16] %v1061, 128
        %1358 = vxpose.xlu0.b32.cont [5/16] 0.0, 128
        %1359 = vxpose.xlu0.b32.cont [6/16] 0.0, 128
        %1360 = vxpose.xlu0.b32.cont [7/16] 0.0, 128
        %1361 = vxpose.xlu0.b32.cont [8/16] 0.0, 128
        %1362 = vxpose.xlu0.b32.cont [9/16] 0.0, 128
        %1363 = vxpose.xlu0.b32.cont [10/16] 0.0, 128
        %1364 = vxpose.xlu0.b32.cont [11/16] 0.0, 128
        %1365 = vxpose.xlu0.b32.cont [12/16] 0.0, 128
        %1366 = vxpose.xlu0.b32.cont [13/16] 0.0, 128
        %1367 = vxpose.xlu0.b32.cont [14/16] 0.0, 128
        %1368 = vxpose.xlu0.b32.cont [15/16] 0.0, 128
        %1369 = vxpose.xlu0.b32.end [16/16] 0.0, 128
        %v1370 = vpop.trf.xlu0
        %v1371 = vpop.trf.xlu0
        %v1372 = vpop.trf.xlu0
        %v1373 = vpop.trf.xlu0
        %v1374 = vpop.trf.xlu0
        %v1375 = vpop.trf.xlu0
        %v1376 = vpop.trf.xlu0
        %v1377 = vpop.trf.xlu0
        %v1378 = vpop.trf.xlu0
        %v1379 = vpop.trf.xlu0
        %v1380 = vpop.trf.xlu0
        %v1381 = vpop.trf.xlu0
        %v1382 = vpop.trf.xlu0
        %v1383 = vpop.trf.xlu0
        %v1384 = vpop.trf.xlu0
        %v1385 = vpop.trf.xlu0
        %1386 = vxpose.xlu0.b32.start [1/16] %v1327, 128
        %1387 = vxpose.xlu0.b32.cont [2/16] %v1331, 128
        %1388 = vxpose.xlu0.b32.cont [3/16] %v1335, 128
        %1389 = vxpose.xlu0.b32.cont [4/16] %v1339, 128
        %1390 = vxpose.xlu0.b32.cont [5/16] 0.0, 128
        %1391 = vxpose.xlu0.b32.cont [6/16] 0.0, 128
        %1392 = vxpose.xlu0.b32.cont [7/16] 0.0, 128
        %1393 = vxpose.xlu0.b32.cont [8/16] 0.0, 128
        %1394 = vxpose.xlu0.b32.cont [9/16] 0.0, 128
        %1395 = vxpose.xlu0.b32.cont [10/16] 0.0, 128
        %1396 = vxpose.xlu0.b32.cont [11/16] 0.0, 128
        %1397 = vxpose.xlu0.b32.cont [12/16] 0.0, 128
        %1398 = vxpose.xlu0.b32.cont [13/16] 0.0, 128
        %1399 = vxpose.xlu0.b32.cont [14/16] 0.0, 128
        %1400 = vxpose.xlu0.b32.cont [15/16] 0.0, 128
        %1401 = vxpose.xlu0.b32.end [16/16] 0.0, 128
        %v1402 = vpop.trf.xlu0
        %v1403 = vpop.trf.xlu0
        %v1404 = vpop.trf.xlu0
        %v1405 = vpop.trf.xlu0
        %v1406 = vpop.trf.xlu0
        %v1407 = vpop.trf.xlu0
        %v1408 = vpop.trf.xlu0
        %v1409 = vpop.trf.xlu0
        %v1410 = vpop.trf.xlu0
        %v1411 = vpop.trf.xlu0
        %v1412 = vpop.trf.xlu0
        %v1413 = vpop.trf.xlu0
        %v1414 = vpop.trf.xlu0
        %v1415 = vpop.trf.xlu0
        %v1416 = vpop.trf.xlu0
        %v1417 = vpop.trf.xlu0
        %1418 = vst.msk [vmem:[%s354] sm:$0xff] %vm371, %v1370
        %1419 = vst.msk [vmem:[%s354 + $0x8] sm:$0xff] %vm371, %v1371
        %1420 = vst.msk [vmem:[%s354 + $0x10] sm:$0xff] %vm371, %v1372
        %1421 = vst.msk [vmem:[%s354 + $0x18] sm:$0xff] %vm371, %v1373
        %1422 = vst.msk [vmem:[%s354 + $0x20] sm:$0xff] %vm371, %v1374
        %1423 = vst.msk [vmem:[%s354 + $0x28] sm:$0xff] %vm371, %v1375
        %1424 = vst.msk [vmem:[%s354 + $0x30] sm:$0xff] %vm371, %v1376
        %1425 = vst.msk [vmem:[%s354 + $0x38] sm:$0xff] %vm371, %v1377
        %1426 = vst.msk [vmem:[%s354 + $0x40] sm:$0xff] %vm371, %v1378
        %1427 = vst.msk [vmem:[%s354 + $0x48] sm:$0xff] %vm371, %v1379
        %1428 = vst.msk [vmem:[%s354 + $0x50] sm:$0xff] %vm371, %v1380
        %1429 = vst.msk [vmem:[%s354 + $0x58] sm:$0xff] %vm371, %v1381
        %1430 = vst.msk [vmem:[%s354 + $0x60] sm:$0xff] %vm371, %v1382
        %1431 = vst.msk [vmem:[%s354 + $0x68] sm:$0xff] %vm371, %v1383
        %1432 = vst.msk [vmem:[%s354 + $0x70] sm:$0xff] %vm371, %v1384
        %1433 = vst.msk [vmem:[%s354 + $0x78] sm:$0xff] %vm371, %v1385
        %1434 = vst.msk [vmem:[%s354 + $0x80] sm:$0xff] %vm371, %v1402
        %1435 = vst.msk [vmem:[%s354 + $0x88] sm:$0xff] %vm371, %v1403
        %1436 = vst.msk [vmem:[%s354 + $0x90] sm:$0xff] %vm371, %v1404
        %1437 = vst.msk [vmem:[%s354 + $0x98] sm:$0xff] %vm371, %v1405
        %1438 = vst.msk [vmem:[%s354 + $0xa0] sm:$0xff] %vm371, %v1406
        %1439 = vst.msk [vmem:[%s354 + $0xa8] sm:$0xff] %vm371, %v1407
        %1440 = vst.msk [vmem:[%s354 + $0xb0] sm:$0xff] %vm371, %v1408
        %1441 = vst.msk [vmem:[%s354 + $0xb8] sm:$0xff] %vm371, %v1409
        %1442 = vst.msk [vmem:[%s354 + $0xc0] sm:$0xff] %vm371, %v1410
        %1443 = vst.msk [vmem:[%s354 + $0xc8] sm:$0xff] %vm371, %v1411
        %1444 = vst.msk [vmem:[%s354 + $0xd0] sm:$0xff] %vm371, %v1412
        %1445 = vst.msk [vmem:[%s354 + $0xd8] sm:$0xff] %vm371, %v1413
        %1446 = vst.msk [vmem:[%s354 + $0xe0] sm:$0xff] %vm371, %v1414
        %1447 = vst.msk [vmem:[%s354 + $0xe8] sm:$0xff] %vm371, %v1415
        %1448 = vst.msk [vmem:[%s354 + $0xf0] sm:$0xff] %vm371, %v1416
        %1449 = vst.msk [vmem:[%s354 + $0xf8] sm:$0xff] %vm371, %v1417
        %s1450 = sand.u32 %s162, 1
        %s1451 = scalar_lea.sflag [#allocation4], %s1450
        %s1452 = sand.u32 %s162, 1
        %s1453 = smul.addr %s1452, 8
        %s1454 = scalar_lea.vmem [#allocation5], %s1453
        %s1455 = sand.u32 %s190, 1
        %s1456 = scalar_lea.sflag [#allocation7], %s1455
        %s1457 = sand.u32 %s190, 1
        %s1458 = smul.addr %s1457, 8
        %s1459 = scalar_lea.vmem [#allocation6], %s1458
        %s1460 = smul.u32 32, %s33
        %p1461 = scmp.lt.s32.totalorder %s32, 1
        %s1462 = scalar_select %p1461, %s32, 1
        %p1463 = scmp.lt.s32.totalorder %s1460, 31
        %s1464 = scalar_select %p1463, %s1460, 31
        %s1465 = smul.addr %s1462, 32
        %s1466 = sadd.s32 %s1464, %s1465
        %s1467 = smul.addr %s1466, 8
        %s1468 = scalar_lea.vmem %s7, %s1467
        // Predicated region
        $region45: #{tpu_custom_call.1} parent=39 // pred_check
          %p1469 = pneg %p172
        $region46: #{tpu_custom_call.1} parent=39 // pred_check_branch
          %1471 = sbr.rel (%p1469) target = $region48
        $region47: #{tpu_custom_call.1} parent=39 // pred_region
          %s1472 = smul.u32 2, %s33
          %1474 = vsyncadd %s1451, 0
          %s1475 = smul.addr %s32, 2
          %s1476 = sadd.s32 %s1472, %s1475
          %s1477 = smul.addr %s1476, 4
          %s1478 = scalar_lea.hbm %s5, %s1477
          %s1480 = sshll.u32 %s1454, 4
          %s1481 = int_to_ptr.vmem [resolvable:$true] %s1480
          %s1482 = sshll.u32 %s1478, 4
          %s1483 = int_to_ptr.hbm [resolvable:$true] %s1482
          %1485 = dma.vmem_to_hbm [thread:$0]  %s1481, 128, %s1483, %s1451
        $region48: #{tpu_custom_call.1} parent=39 // pred_fallthru
          _
        // Predicated region
        $region49: #{tpu_custom_call.1} parent=39 // pred_check
          %p1486 = pneg %p200
        $region50: #{tpu_custom_call.1} parent=39 // pred_check_branch
          %1488 = sbr.rel (%p1486) target = $region52
        $region51: #{tpu_custom_call.1} parent=39 // pred_region
          %s1489 = smul.u32 2, %s33
          %1491 = vsyncadd %s1456, 0
          %s1492 = smul.addr %s32, 2
          %s1493 = sadd.s32 %s1489, %s1492
          %s1494 = smul.addr %s1493, 4
          %s1495 = scalar_lea.hbm %s6, %s1494
          %s1497 = sshll.u32 %s1459, 4
          %s1498 = int_to_ptr.vmem [resolvable:$true] %s1497
          %s1499 = sshll.u32 %s1495, 4
          %s1500 = int_to_ptr.hbm [resolvable:$true] %s1499
          %1502 = dma.vmem_to_hbm [thread:$0]  %s1498, 128, %s1500, %s1456
        $region52: #{tpu_custom_call.1} parent=39 // pred_fallthru
          _
        // Predicated region
        $region53: #{tpu_custom_call.1} parent=39 // pred_check
          %p1503 = pneg %p228
        $region54: #{tpu_custom_call.1} parent=39 // pred_check_branch
          %1505 = sbr.rel (%p1503) target = $region56
        $region55: #{tpu_custom_call.1} parent=39 // pred_region
          %s1506 = smul.u32 32, %s33
        $region56: #{tpu_custom_call.1} parent=39 // pred_fallthru
          _
      $region40: #{tpu_custom_call.1} parent=5 // pred_fallthru
        _
      %p1507 = scmp.le.s32.totalorder 2, %s23
      // Predicated region
      $region57: #{tpu_custom_call.1} parent=5 // pred_check
        %p1508 = pneg %p1507
      $region58: #{tpu_custom_call.1} parent=5 // pred_check_branch
        %1510 = sbr.rel (%p1508) target = $region60
      $region59: #{tpu_custom_call.1} parent=5 // pred_region
        %s1511 = ssub.s32 %s23, 2
        // Predicated region
        $region61: #{tpu_custom_call.1} parent=59 // pred_check
          %p1512 = pneg %p178
        $region62: #{tpu_custom_call.1} parent=59 // pred_check_branch
          %1514 = sbr.rel (%p1512) target = $region64
        $region63: #{tpu_custom_call.1} parent=59 // pred_region
          %s1515 = sand.u32 %s163, 1
          %s1516 = scalar_lea.sflag [#allocation4], %s1515
          %s1517 = sand.u32 %s163, 1
          %s1518 = smul.addr %s1517, 8
          %s1519 = scalar_lea.vmem [#allocation5], %s1518
          %1521 = dma.done %s1516, 128
        $region64: #{tpu_custom_call.1} parent=59 // pred_fallthru
          _
        // Predicated region
        $region65: #{tpu_custom_call.1} parent=59 // pred_check
          %p1522 = pneg %p206
        $region66: #{tpu_custom_call.1} parent=59 // pred_check_branch
          %1524 = sbr.rel (%p1522) target = $region68
        $region67: #{tpu_custom_call.1} parent=59 // pred_region
          %s1525 = sand.u32 %s191, 1
          %s1526 = scalar_lea.sflag [#allocation7], %s1525
          %s1527 = sand.u32 %s191, 1
          %s1528 = smul.addr %s1527, 8
          %s1529 = scalar_lea.vmem [#allocation6], %s1528
          %1531 = dma.done %s1526, 128
        $region68: #{tpu_custom_call.1} parent=59 // pred_fallthru
          _
        // Predicated region
        $region69: #{tpu_custom_call.1} parent=59 // pred_check
          %p1532 = pneg %p234
        $region70: #{tpu_custom_call.1} parent=59 // pred_check_branch
          %1534 = sbr.rel (%p1532) target = $region72
        $region71: #{tpu_custom_call.1} parent=59 // pred_region
          %s1535 = smul.u32 32, %s35
          %p1536 = scmp.lt.s32.totalorder %s34, 1
          %s1537 = scalar_select %p1536, %s34, 1
          %p1538 = scmp.lt.s32.totalorder %s1535, 31
          %s1539 = scalar_select %p1538, %s1535, 31
          %s1540 = smul.addr %s1537, 32
          %s1541 = sadd.s32 %s1539, %s1540
          %s1542 = smul.addr %s1541, 8
          %s1543 = scalar_lea.vmem %s7, %s1542
        $region72: #{tpu_custom_call.1} parent=59 // pred_fallthru
          _
      $region60: #{tpu_custom_call.1} parent=5 // pred_fallthru
        _
    $region6: #{tpu_custom_call.1} parent=1 // loop_footer
      %s27 = sadd.s32 1, %s23
    $region7: #{tpu_custom_call.1} parent=1 // loop_footer_branch
      %22 = sbr.rel target = $region3
    $region8: #{tpu_custom_call.1} parent=1 // loop_exit
      _
    %1544 = vsyncpa [#allocation3], 1
    %s1545 = scalar_lea.sflag [#allocation3], 1
    %1546 = vsyncpa %s1545, 1
    %1547 = vsyncpa [#allocation4], 1
    %s1548 = scalar_lea.sflag [#allocation4], 1
    %1549 = vsyncpa %s1548, 1
    %1550 = vsyncpa [#allocation7], 1
    %s1551 = scalar_lea.sflag [#allocation7], 1
    %1552 = vsyncpa %s1551, 1

</llo_original>
